<compile_context>
chip_gen: v6e
topology: v6e:2x2x1
jax: 0.10.0
libtpu: 0.0.40
codegen_flags: <defaults>
</compile_context>

<pallas_src>
import jax
import jax.numpy as jnp
from jax.experimental import pallas as pl
from jax.experimental.pallas import tpu as pltpu

DP = 128  # lane-dense working width (feature / hidden / class dims padded to this)


# ----------------------------- Pallas kernel -------------------------------
def _action_gnn_kernel(x_ref, adj_ref, pool_ref, w_ref, b_ref, out_ref):
    """Fused 2xGCN + score-gated sum readout + Linear for one graph super-block.

    x_ref:    (S, DP)    bf16  node features (lane-padded)
    adj_ref:  (S, S)     bf16  block-diagonal normalized adjacency (leading
                               grid dim squeezed by the BlockSpec)
    pool_ref: (GB, S)    bf16  per-graph sum-readout selector (resident)
    w_ref:    (3*DP, DP) bf16  packed W1 | W2 | Wc (each padded to DP x DP)
    b_ref:    (8, DP)    f32   packed b1 | b2 | ws | bc | bs rows
    out_ref:  (GB, DP)   f32   lane-dense logits (real classes in lanes 0:11)
    """
    f32, bf16 = jnp.float32, jnp.bfloat16
    Dp = x_ref.shape[1]

    x = x_ref[...]
    adj = adj_ref[...]
    pool = pool_ref[...]

    # packed parameter slabs (static, zero-cost ref slices)
    w1 = w_ref[0 * Dp:1 * Dp, :]
    w2 = w_ref[1 * Dp:2 * Dp, :]
    wc = w_ref[2 * Dp:3 * Dp, :]
    b1 = b_ref[0:1, :]
    b2 = b_ref[1:2, :]
    ws = b_ref[2:3, :]
    bc = b_ref[3:4, :]
    bs = b_ref[4:5, 0:1]

    # ---- GCN block 1: relu(A @ (X @ W1) + b1) ----
    h = jnp.dot(x, w1, preferred_element_type=f32)
    h = jnp.dot(adj, h.astype(bf16), preferred_element_type=f32) + b1
    h = jnp.maximum(h, 0.0).astype(bf16)

    # ---- GCN block 2 ----
    h = jnp.dot(h, w2, preferred_element_type=f32)
    h2 = jnp.dot(adj, h.astype(bf16), preferred_element_type=f32) + b2
    h2 = jnp.maximum(h2, 0.0)                                        # (S, DP) f32

    # ---- SAGPooling-style score: tanh(A @ (H2 @ ws) + bs) ----
    # Matvec form (perf review): one (S,S)@(S,1) MXU pass instead of a third
    # full-width A @ H2 matmul.
    r = jnp.sum(h2 * ws, axis=-1, keepdims=True)                     # (S, 1) f32
    s = jnp.tanh(jnp.dot(adj, r.astype(bf16), preferred_element_type=f32) + bs)
    gated = (h2 * s).astype(bf16)                                    # (S, DP)

    # ---- per-graph sum readout via resident selector + ReLU ----
    g = jnp.dot(pool, gated, preferred_element_type=f32)             # (GB, DP)
    g = jnp.maximum(g, 0.0).astype(bf16)

    # ---- classification head (classes 0:11, remaining lanes are zero) ----
    out_ref[...] = jnp.dot(g, wc, preferred_element_type=f32) + bc


# ------------------------------- wrapper ------------------------------------
def _pick_graphs_per_block(batch, m, max_nodes):
    """One fat super-block if it fits (best on 1-TC v5e/v6e); otherwise the
    largest divisor of `batch` whose node count fits, preferring S % 128 == 0
    for full-lane adjacency tiles and MXU fill."""
    if batch * m <= max_nodes:
        return batch

    def valid(gb):
        s = gb * m
        return batch % gb == 0 and s <= max_nodes and gb % 8 == 0 and s % 8 == 0

    fallback = None
    for gb in range(batch, 0, -1):
        if not valid(gb):
            continue
        if (gb * m) % 128 == 0:
            return gb
        if fallback is None:
            fallback = gb
    return fallback if fallback is not None else batch


def action_net_gnn_stream_forward(obj_features, adj_blocks,
                                  w1, b1, w2, b2, ws, bs, wc, bc,
                                  *, graphs_per_block=None,
                                  max_nodes_per_block=512):
    """obj_features: (B, M, D_in) f32; adj_blocks: (B, M, M) per-graph
    GCN-normalized adjacency.  Returns (B, 11) f32 logits."""
    f32, bf16 = jnp.float32, jnp.bfloat16
    B, M, d_in = obj_features.shape
    d_out = w1.shape[1]
    n_cls = wc.shape[1]
    assert max(d_in, d_out, n_cls) <= DP

    # ---- graph-batch tiling.  v7x: pass graphs_per_block = B // (2k) for an
    # even >=2-step grid so the "parallel" axis shards across both TCs.
    # v5e/v6e: the auto choice (one fat step when it fits) is preferred. ----
    GB = graphs_per_block
    if (GB is None or GB <= 0 or GB > B or B % GB != 0 or
            not (GB == B or (GB % 8 == 0 and (GB * M) % 8 == 0))):
        GB = _pick_graphs_per_block(B, M, max_nodes_per_block)
    n_sb = B // GB
    S = GB * M

    # ---- node features: flatten, zero-pad feature dim to 128 lanes, bf16 ----
    x = jnp.zeros((B * M, DP), bf16).at[:, :d_in].set(
        obj_features.reshape(B * M, d_in).astype(bf16))

    # ---- block-diagonal adjacency super-blocks (n_sb, S, S), bf16 ----
    # S is capped (max_nodes_per_block) so the S^2 zero-padded tile stays a
    # few hundred KiB.
    # TODO(synk): for very large GB, ship the compact (GB, M, M) blocks and
    # expand/mask to (S, S) in-kernel instead of the dense block-diagonal.
    a = adj_blocks.reshape(n_sb, GB, M, M).astype(f32)
    eye = jnp.eye(GB, dtype=f32)
    adj_sb = jnp.einsum('sgmn,gh->sgmhn', a, eye).reshape(n_sb, S, S).astype(bf16)

    # ---- per-graph sum-readout selector, built once in the wrapper (hoisted
    # out of the per-step body per the perf review) ----
    pool = (jnp.arange(S)[None, :] // M == jnp.arange(GB)[:, None]).astype(bf16)

    # ---- pack the eight parameter tensors into two resident slabs ----
    wslab = jnp.zeros((3 * DP, DP), bf16)
    wslab = wslab.at[0:d_in, 0:d_out].set(w1.astype(bf16))
    wslab = wslab.at[DP:DP + d_out, 0:d_out].set(w2.astype(bf16))
    wslab = wslab.at[2 * DP:2 * DP + d_out, 0:n_cls].set(wc.astype(bf16))

    bslab = jnp.zeros((8, DP), f32)
    bslab = bslab.at[0, 0:d_out].set(jnp.ravel(b1).astype(f32))
    bslab = bslab.at[1, 0:d_out].set(jnp.ravel(b2).astype(f32))
    bslab = bslab.at[2, 0:d_out].set(jnp.ravel(ws).astype(f32))
    bslab = bslab.at[3, 0:n_cls].set(jnp.ravel(bc).astype(f32))
    bslab = bslab.at[4, 0].set(jnp.ravel(jnp.asarray(bs, f32))[0])

    out = pl.pallas_call(
        _action_gnn_kernel,
        out_shape=jax.ShapeDtypeStruct((B, DP), f32),
        grid=(n_sb,),
        in_specs=[
            pl.BlockSpec((S, DP), lambda g: (g, 0)),           # node features
            pl.BlockSpec((None, S, S), lambda g: (g, 0, 0)),   # adjacency (leading dim squeezed)
            pl.BlockSpec((GB, S), lambda g: (0, 0)),           # readout selector (resident)
            pl.BlockSpec((3 * DP, DP), lambda g: (0, 0)),      # weights (resident)
            pl.BlockSpec((8, DP), lambda g: (0, 0)),           # biases (resident)
        ],
        out_specs=pl.BlockSpec((GB, DP), lambda g: (g, 0)),
        compiler_params=pltpu.CompilerParams(
            dimension_semantics=("parallel",)),                # 2-TC sharding on v7x when n_sb >= 2
    )(x, adj_sb, pool, wslab, bslab)

    return out[:, :n_cls]                                      # lane-dense -> 11 classes


# ------------------------------ JAX glue -------------------------------------
def build_norm_adj_blocks(collated_edge_index, batch_size, max_num_obj):
    """Per-graph dense GCN-normalized adjacency D^-1/2 (A + I) D^-1/2, (B, M, M).

    Assumes the collated edge index only connects nodes of the same graph
    (true for a collated graph batch), so only the diagonal blocks are built
    — no dense (N, N) intermediate."""
    src, dst = collated_edge_index[0], collated_edge_index[1]
    g = src // max_num_obj
    ls, ld = src % max_num_obj, dst % max_num_obj
    a = jnp.zeros((batch_size, max_num_obj, max_num_obj), jnp.float32)
    a = a.at[g, ld, ls].set(1.0)
    a = a.at[g, ls, ld].set(1.0)
    a = jnp.minimum(a + jnp.eye(max_num_obj, dtype=jnp.float32)[None], 1.0)
    deg = a.sum(axis=2)
    d_inv_sqrt = jax.lax.rsqrt(deg)                 # deg >= 1 (self loops) -> safe
    return a * d_inv_sqrt[:, :, None] * d_inv_sqrt[:, None, :]


def reference_forward(obj_features, adj_blocks, w1, b1, w2, b2, ws, bs, wc, bc):
    """Pure-JAX f32 reference of the same forward pass (tolerance check)."""
    B, M, _ = obj_features.shape
    a = adj_blocks.astype(jnp.float32)                       # (B, M, M)
    x = obj_features.astype(jnp.float32)                     # (B, M, D_in)

    h = jnp.einsum('bmn,bnd->bmd', a, x @ w1) + b1
    h = jax.nn.relu(h)
    h2 = jnp.einsum('bmn,bnd->bmd', a, h @ w2) + b2
    h2 = jax.nn.relu(h2)

    r = h2 @ ws.reshape(-1, 1)                               # (B, M, 1)
    s = jnp.tanh(jnp.einsum('bmn,bnk->bmk', a, r) + bs)
    g = jax.nn.relu((h2 * s).sum(axis=1))                    # (B, D_out)
    return g @ wc + bc


if __name__ == "__main__":
    key = jax.random.PRNGKey(0)
    keys = jax.random.split(key, 10)

    # ---- small config implied by the module ----
    # batch=32, 8 nodes/graph -> 256 total nodes: a single MXU-friendly
    # S=256 super-block in the default configuration.
    B, M = 32, 8                       # batch (graphs), max_num_obj (nodes/graph)
    feat_dims = (12, 20)               # node_features list -> concat along dim 2
    D_in = sum(feat_dims)              # gnn_in_dim = 32
    D_out = 32                         # gnn_out_dim
    N_CLS = 11

    # ---- data_item (synthetic) ----
    static_feats = jax.random.normal(keys[0], (B, M, feat_dims[0]), jnp.float32)
    temporal_feats = jax.random.normal(keys[1], (B, M, feat_dims[1]), jnp.float32)
    obj_features = jnp.concatenate([static_feats, temporal_feats], axis=2)  # (B, M, D_in)

    # collated_edge_index: a ring within each graph (deterministic)
    src, dst = [], []
    for b in range(B):
        base = b * M
        for m in range(M):
            src.append(base + m)
            dst.append(base + (m + 1) % M)
    collated_edge_index = jnp.array([src, dst], dtype=jnp.int32)
    adj_blocks = build_norm_adj_blocks(collated_edge_index, B, M)           # (B, M, M)

    # ---- deterministic parameter init ----
    def init(k, shape, scale=0.1):
        return scale * jax.random.normal(k, shape, jnp.float32)

    w1 = init(keys[2], (D_in, D_out));  b1 = init(keys[3], (D_out,))
    w2 = init(keys[4], (D_out, D_out)); b2 = init(keys[5], (D_out,))
    ws = init(keys[6], (D_out,));       bs = init(keys[7], ())
    wc = init(keys[8], (D_out, N_CLS)); bc = init(keys[9], (N_CLS,))

    # default tiling: one fat step, S = 256
    logits = action_net_gnn_stream_forward(
        obj_features, adj_blocks, w1, b1, w2, b2, ws, bs, wc, bc)
    # explicit 2-step tiling (S = 128): exercises the grid path / v7x-style split
    logits2 = action_net_gnn_stream_forward(
        obj_features, adj_blocks, w1, b1, w2, b2, ws, bs, wc, bc,
        graphs_per_block=16)
    jax.block_until_ready((logits, logits2))

    ref = reference_forward(obj_features, adj_blocks, w1, b1, w2, b2, ws, bs, wc, bc)

    assert logits.shape == (B, N_CLS), logits.shape
    assert logits2.shape == (B, N_CLS), logits2.shape
    assert bool(jnp.all(jnp.isfinite(logits)))
    assert bool(jnp.allclose(logits, logits2, atol=1e-3, rtol=1e-3))
    assert bool(jnp.allclose(logits, ref, atol=5e-2, rtol=5e-2))
    print("KERNEL_OK")
</pallas_src>

<mosaic_0001>
module attributes {stable_mosaic.version = 11 : i64} {
  func.func @_action_gnn_kernel(%arg0: i32, %arg1: memref<256x128xbf16, #tpu.memory_space<vmem>>, %arg2: memref<1x256x256xbf16, #tpu.memory_space<vmem>>, %arg3: memref<32x256xbf16, #tpu.memory_space<vmem>>, %arg4: memref<384x128xbf16, #tpu.memory_space<vmem>>, %arg5: memref<8x128xf32, #tpu.memory_space<vmem>>, %arg6: memref<32x128xf32, #tpu.memory_space<vmem>>) attributes {dimension_semantics = [#tpu.dimension_semantics<parallel>], iteration_bounds = array<i64: 1>, scalar_prefetch = 0 : i64, scratch_operands = 0 : i64, tpu.core_type = #tpu.core_type<tc>, window_params = [{transform_indices = @transform_0, window_bounds = array<i64: 256, 128>}, {transform_indices = @transform_1, window_bounds = array<i64: 1, 256, 256>}, {pipeline_mode = #tpu.pipeline_mode<synchronous>, transform_indices = @transform_2, window_bounds = array<i64: 32, 256>}, {pipeline_mode = #tpu.pipeline_mode<synchronous>, transform_indices = @transform_3, window_bounds = array<i64: 384, 128>}, {pipeline_mode = #tpu.pipeline_mode<synchronous>, transform_indices = @transform_4, window_bounds = array<i64: 8, 128>}, {transform_indices = @transform_5, window_bounds = array<i64: 32, 128>}]} {
    %c0 = arith.constant 0 : index
    %c0_0 = arith.constant 0 : index
    %0 = vector.load %arg1[%c0, %c0_0] : memref<256x128xbf16, #tpu.memory_space<vmem>>, vector<256x128xbf16>
    %c0_1 = arith.constant 0 : index
    %c0_2 = arith.constant 0 : index
    %c0_3 = arith.constant 0 : index
    %1 = vector.load %arg2[%c0_1, %c0_2, %c0_3] : memref<1x256x256xbf16, #tpu.memory_space<vmem>>, vector<1x256x256xbf16>
    %2 = vector.shape_cast %1 : vector<1x256x256xbf16> to vector<256x256xbf16>
    %c0_4 = arith.constant 0 : index
    %c0_5 = arith.constant 0 : index
    %3 = vector.load %arg3[%c0_4, %c0_5] : memref<32x256xbf16, #tpu.memory_space<vmem>>, vector<32x256xbf16>
    %c0_6 = arith.constant 0 : index
    %c0_7 = arith.constant 0 : index
    %4 = vector.load %arg4[%c0_6, %c0_7] : memref<384x128xbf16, #tpu.memory_space<vmem>>, vector<128x128xbf16>
    %c128 = arith.constant 128 : index
    %c0_8 = arith.constant 0 : index
    %5 = vector.load %arg4[%c128, %c0_8] : memref<384x128xbf16, #tpu.memory_space<vmem>>, vector<128x128xbf16>
    %c256 = arith.constant 256 : index
    %c0_9 = arith.constant 0 : index
    %6 = vector.load %arg4[%c256, %c0_9] : memref<384x128xbf16, #tpu.memory_space<vmem>>, vector<128x128xbf16>
    %c0_10 = arith.constant 0 : index
    %c0_11 = arith.constant 0 : index
    %7 = vector.load %arg5[%c0_10, %c0_11] : memref<8x128xf32, #tpu.memory_space<vmem>>, vector<1x128xf32>
    %c1 = arith.constant 1 : index
    %c0_12 = arith.constant 0 : index
    %8 = vector.load %arg5[%c1, %c0_12] : memref<8x128xf32, #tpu.memory_space<vmem>>, vector<1x128xf32>
    %c2 = arith.constant 2 : index
    %c0_13 = arith.constant 0 : index
    %9 = vector.load %arg5[%c2, %c0_13] : memref<8x128xf32, #tpu.memory_space<vmem>>, vector<1x128xf32>
    %c3 = arith.constant 3 : index
    %c0_14 = arith.constant 0 : index
    %10 = vector.load %arg5[%c3, %c0_14] : memref<8x128xf32, #tpu.memory_space<vmem>>, vector<1x128xf32>
    %c4 = arith.constant 4 : index
    %c0_15 = arith.constant 0 : index
    %11 = vector.load %arg5[%c4, %c0_15] : memref<8x128xf32, #tpu.memory_space<vmem>>, vector<1x1xf32>
    %cst = arith.constant dense<0.000000e+00> : vector<256x128xf32>
    %12 = tpu.matmul %0, %4, %cst {dimension_numbers = #tpu.dot_dimension_numbers<[1], [0], [0], [1], [0, 0, 1, 1], [], []>} : vector<256x128xbf16>, vector<128x128xbf16>, vector<256x128xf32> -> vector<256x128xf32>
    %13 = arith.truncf %12 : vector<256x128xf32> to vector<256x128xbf16>
    %cst_16 = arith.constant dense<0.000000e+00> : vector<256x128xf32>
    %14 = tpu.matmul %2, %13, %cst_16 {dimension_numbers = #tpu.dot_dimension_numbers<[1], [0], [0], [1], [0, 0, 1, 1], [], []>} : vector<256x256xbf16>, vector<256x128xbf16>, vector<256x128xf32> -> vector<256x128xf32>
    %15 = vector.broadcast %7 : vector<1x128xf32> to vector<256x128xf32>
    %16 = arith.addf %14, %15 : vector<256x128xf32>
    %cst_17 = arith.constant 0.000000e+00 : f32
    %17 = vector.broadcast %cst_17 : f32 to vector<256x128xf32>
    %18 = arith.maximumf %16, %17 : vector<256x128xf32>
    %19 = arith.truncf %18 : vector<256x128xf32> to vector<256x128xbf16>
    %cst_18 = arith.constant dense<0.000000e+00> : vector<256x128xf32>
    %20 = tpu.matmul %19, %5, %cst_18 {dimension_numbers = #tpu.dot_dimension_numbers<[1], [0], [0], [1], [0, 0, 1, 1], [], []>} : vector<256x128xbf16>, vector<128x128xbf16>, vector<256x128xf32> -> vector<256x128xf32>
    %21 = arith.truncf %20 : vector<256x128xf32> to vector<256x128xbf16>
    %cst_19 = arith.constant dense<0.000000e+00> : vector<256x128xf32>
    %22 = tpu.matmul %2, %21, %cst_19 {dimension_numbers = #tpu.dot_dimension_numbers<[1], [0], [0], [1], [0, 0, 1, 1], [], []>} : vector<256x256xbf16>, vector<256x128xbf16>, vector<256x128xf32> -> vector<256x128xf32>
    %23 = vector.broadcast %8 : vector<1x128xf32> to vector<256x128xf32>
    %24 = arith.addf %22, %23 : vector<256x128xf32>
    %cst_20 = arith.constant 0.000000e+00 : f32
    %25 = vector.broadcast %cst_20 : f32 to vector<256x128xf32>
    %26 = arith.maximumf %24, %25 : vector<256x128xf32>
    %27 = vector.broadcast %9 : vector<1x128xf32> to vector<256x128xf32>
    %28 = arith.mulf %26, %27 : vector<256x128xf32>
    %cst_21 = arith.constant dense<0.000000e+00> : vector<256xf32>
    %29 = vector.multi_reduction <add>, %28, %cst_21 [1] : vector<256x128xf32> to vector<256xf32>
    %30 = vector.shape_cast %29 : vector<256xf32> to vector<256x1xf32>
    %31 = arith.truncf %30 : vector<256x1xf32> to vector<256x1xbf16>
    %cst_22 = arith.constant dense<0.000000e+00> : vector<256x1xf32>
    %32 = tpu.matmul %2, %31, %cst_22 {dimension_numbers = #tpu.dot_dimension_numbers<[1], [0], [0], [1], [0, 0, 1, 1], [], []>} : vector<256x256xbf16>, vector<256x1xbf16>, vector<256x1xf32> -> vector<256x1xf32>
    %33 = vector.broadcast %11 : vector<1x1xf32> to vector<256x1xf32>
    %34 = arith.addf %32, %33 : vector<256x1xf32>
    %35 = math.tanh %34 : vector<256x1xf32>
    %36 = vector.broadcast %35 : vector<256x1xf32> to vector<256x128xf32>
    %37 = arith.mulf %26, %36 : vector<256x128xf32>
    %38 = arith.truncf %37 : vector<256x128xf32> to vector<256x128xbf16>
    %cst_23 = arith.constant dense<0.000000e+00> : vector<32x128xf32>
    %39 = tpu.matmul %3, %38, %cst_23 {dimension_numbers = #tpu.dot_dimension_numbers<[1], [0], [0], [1], [0, 0, 1, 1], [], []>} : vector<32x256xbf16>, vector<256x128xbf16>, vector<32x128xf32> -> vector<32x128xf32>
    %cst_24 = arith.constant 0.000000e+00 : f32
    %40 = vector.broadcast %cst_24 : f32 to vector<32x128xf32>
    %41 = arith.maximumf %39, %40 : vector<32x128xf32>
    %42 = arith.truncf %41 : vector<32x128xf32> to vector<32x128xbf16>
    %cst_25 = arith.constant dense<0.000000e+00> : vector<32x128xf32>
    %43 = tpu.matmul %42, %6, %cst_25 {dimension_numbers = #tpu.dot_dimension_numbers<[1], [0], [0], [1], [0, 0, 1, 1], [], []>} : vector<32x128xbf16>, vector<128x128xbf16>, vector<32x128xf32> -> vector<32x128xf32>
    %44 = vector.broadcast %10 : vector<1x128xf32> to vector<32x128xf32>
    %45 = arith.addf %43, %44 : vector<32x128xf32>
    %c0_26 = arith.constant 0 : index
    %c0_27 = arith.constant 0 : index
    %46 = vector.load %arg6[%c0_26, %c0_27] : memref<32x128xf32, #tpu.memory_space<vmem>>, vector<32x128xf32>
    tpu.vector_store %arg6[%c0_26, %c0_27], %45 {strides = array<i32>} : memref<32x128xf32, #tpu.memory_space<vmem>>, vector<32x128xf32>,
    return
  }
  func.func @transform_0(%arg0: i32) -> (i32, i32) {
    %c0_i32 = arith.constant 0 : i32
    %c0_i32_0 = arith.constant 0 : i32
    return %arg0, %c0_i32 : i32, i32
  }
  func.func @transform_1(%arg0: i32) -> (i32, i32, i32) {
    %c0_i32 = arith.constant 0 : i32
    %c0_i32_0 = arith.constant 0 : i32
    %c0_i32_1 = arith.constant 0 : i32
    return %arg0, %c0_i32, %c0_i32_0 : i32, i32, i32
  }
  func.func @transform_2(%arg0: i32) -> (i32, i32) {
    %c0_i32 = arith.constant 0 : i32
    %c0_i32_0 = arith.constant 0 : i32
    %c0_i32_1 = arith.constant 0 : i32
    return %c0_i32, %c0_i32_0 : i32, i32
  }
  func.func @transform_3(%arg0: i32) -> (i32, i32) {
    %c0_i32 = arith.constant 0 : i32
    %c0_i32_0 = arith.constant 0 : i32
    %c0_i32_1 = arith.constant 0 : i32
    return %c0_i32, %c0_i32_0 : i32, i32
  }
  func.func @transform_4(%arg0: i32) -> (i32, i32) {
    %c0_i32 = arith.constant 0 : i32
    %c0_i32_0 = arith.constant 0 : i32
    %c0_i32_1 = arith.constant 0 : i32
    return %c0_i32, %c0_i32_0 : i32, i32
  }
  func.func @transform_5(%arg0: i32) -> (i32, i32) {
    %c0_i32 = arith.constant 0 : i32
    %c0_i32_0 = arith.constant 0 : i32
    return %arg0, %c0_i32 : i32, i32
  }
}

</mosaic_0001>

<llo_original>
// kernel: tpu_custom_call.1
$region0: #{tpu_custom_call.1}
  #allocation0 [shape = 'u32[]', space=smem, size = 0x4, offset = 0x4, fixed_abs, tag = 'smem constant byte address 0x4 - core index']
  #allocation1 [shape = 'u32[144,128]{1,0:T(1,128)}', space=vmem, size = 0x12000, scoped, tag = 'internal scratch']
  %s0 = inlined_call_operand.hbm [shape: bf16[256,128], index: 0, kind: input, shape index: {}]
  %s1 = inlined_call_operand.hbm [shape: bf16[1,256,256], index: 1, kind: input, shape index: {}]
  %s2 = inlined_call_operand.hbm [shape: bf16[32,256], index: 2, kind: input, shape index: {}]
  %s3 = inlined_call_operand.hbm [shape: bf16[384,128], index: 3, kind: input, shape index: {}]
  %s4 = inlined_call_operand.hbm [shape: f32[8,128], index: 4, kind: input, shape index: {}]
  %s5 = inlined_call_operand.hbm [shape: f32[32,128], index: 5, kind: output, shape index: {}]
  %s6 = sld [smem:[#allocation0]]
  $region50: #{tpu_custom_call.1} parent=0
    _
  %s8 = ssub.s32 1, %s6
  %s9 = scalar_select 0, %s8, %s6
  $region1: #{tpu_custom_call.1} parent=0
    #allocation2 [shape = 'u8[65536]{0}', space=vmem, size = 0x10000, scoped, tag = 'input window, operand 0, single buffered']
    #allocation3 [shape = 's32[1]{0}', space=sflag, size = 0x4, scoped, tag = 'scoped memory for tpu_custom_call.1']
    #allocation4 [shape = 's32[1]{0}', space=sflag, size = 0x4, scoped, tag = 'scoped memory for tpu_custom_call.1']
    #allocation5 [shape = 'u8[131072]{0}', space=vmem, size = 0x20000, scoped, tag = 'input window, operand 1, single buffered']
    #allocation6 [shape = 's32[1]{0}', space=sflag, size = 0x4, scoped, tag = 'scoped memory for tpu_custom_call.1']
    #allocation7 [shape = 'u8[16384]{0}', space=vmem, size = 0x4000, scoped, tag = 'input window, operand 2, single buffered']
    #allocation8 [shape = 'u8[98304]{0}', space=vmem, size = 0x18000, scoped, tag = 'input window, operand 3, single buffered']
    #allocation9 [shape = 's32[1]{0}', space=sflag, size = 0x4, scoped, tag = 'scoped memory for tpu_custom_call.1']
    #allocation10 [shape = 'u8[4096]{0}', space=vmem, size = 0x1000, scoped, tag = 'input window, operand 4, single buffered']
    #allocation11 [shape = 'u8[16384]{0}', space=vmem, size = 0x4000, scoped, tag = 'output window, operand 0, single buffered']
    %10 = vsyncpa [#allocation3], 0
    %11 = vsyncpa [#allocation6], 0
    %12 = vsyncpa [#allocation9], 0
    %13 = vsyncpa [#allocation4], 0
    // Predicated region
    $region2: #{tpu_custom_call.1} parent=1 // pred_check
      _
    $region3: #{tpu_custom_call.1} parent=1 // pred_check_branch
      %15 = sbr.rel (0) target = $region5
    $region4: #{tpu_custom_call.1} parent=1 // pred_region
      %s17 = ssub.s32 2048, 2048
      %18 = vsyncadd [#allocation3], %s17
      %s19 = sshll.u32 [#allocation2], 4
      %s20 = int_to_ptr.vmem [resolvable:$true] %s19
      %25 = dma.hbm_to_vmem [thread:$0]  %s0, 2048, %s20, [#allocation3], 64, 64, 4
    $region5: #{tpu_custom_call.1} parent=1 // pred_fallthru
      _
    // Predicated region
    $region6: #{tpu_custom_call.1} parent=1 // pred_check
      _
    $region7: #{tpu_custom_call.1} parent=1 // pred_check_branch
      %27 = sbr.rel (0) target = $region9
    $region8: #{tpu_custom_call.1} parent=1 // pred_region
      %s29 = ssub.s32 4096, 4096
      %30 = vsyncadd [#allocation6], %s29
      %s31 = sshll.u32 [#allocation5], 4
      %s32 = int_to_ptr.vmem [resolvable:$true] %s31
      %37 = dma.hbm_to_vmem [thread:$0]  %s1, 4096, %s32, [#allocation6], 128, 128, 8
    $region9: #{tpu_custom_call.1} parent=1 // pred_fallthru
      _
    // Predicated region
    $region10: #{tpu_custom_call.1} parent=1 // pred_check
      _
    $region11: #{tpu_custom_call.1} parent=1 // pred_check_branch
      %39 = sbr.rel (0) target = $region13
    $region12: #{tpu_custom_call.1} parent=1 // pred_region
      %s41 = ssub.s32 512, 512
      %42 = vsyncadd [#allocation6], %s41
      %s43 = sshll.u32 [#allocation7], 4
      %s44 = int_to_ptr.vmem [resolvable:$true] %s43
      %49 = dma.hbm_to_vmem [thread:$0]  %s2, 512, %s44, [#allocation6], 128, 128, 8
    $region13: #{tpu_custom_call.1} parent=1 // pred_fallthru
      _
    // Predicated region
    $region14: #{tpu_custom_call.1} parent=1 // pred_check
      _
    $region15: #{tpu_custom_call.1} parent=1 // pred_check_branch
      %51 = sbr.rel (0) target = $region17
    $region16: #{tpu_custom_call.1} parent=1 // pred_region
      %s53 = ssub.s32 3072, 3072
      %54 = vsyncadd [#allocation9], %s53
      %s55 = sshll.u32 [#allocation8], 4
      %s56 = int_to_ptr.vmem [resolvable:$true] %s55
      %61 = dma.hbm_to_vmem [thread:$0]  %s3, 3072, %s56, [#allocation9], 64, 64, 4
    $region17: #{tpu_custom_call.1} parent=1 // pred_fallthru
      _
    // Predicated region
    $region18: #{tpu_custom_call.1} parent=1 // pred_check
      _
    $region19: #{tpu_custom_call.1} parent=1 // pred_check_branch
      %63 = sbr.rel (0) target = $region21
    $region20: #{tpu_custom_call.1} parent=1 // pred_region
      %s65 = ssub.s32 128, 128
      %66 = vsyncadd [#allocation9], %s65
      %s68 = sshll.u32 [#allocation10], 4
      %s69 = int_to_ptr.vmem [resolvable:$true] %s68
      %71 = dma.hbm_to_vmem [thread:$0]  %s4, 128, %s69, [#allocation9]
    $region21: #{tpu_custom_call.1} parent=1 // pred_fallthru
      _
    // Predicated region
    $region22: #{tpu_custom_call.1} parent=1 // pred_check
      _
    $region23: #{tpu_custom_call.1} parent=1 // pred_check_branch
      %73 = sbr.rel (0) target = $region25
    $region24: #{tpu_custom_call.1} parent=1 // pred_region
      %74 = dma.done [#allocation3], 2048
    $region25: #{tpu_custom_call.1} parent=1 // pred_fallthru
      _
    // Predicated region
    $region26: #{tpu_custom_call.1} parent=1 // pred_check
      _
    $region27: #{tpu_custom_call.1} parent=1 // pred_check_branch
      %76 = sbr.rel (0) target = $region29
    $region28: #{tpu_custom_call.1} parent=1 // pred_region
      %77 = dma.done [#allocation6], 4096
    $region29: #{tpu_custom_call.1} parent=1 // pred_fallthru
      _
    // Predicated region
    $region30: #{tpu_custom_call.1} parent=1 // pred_check
      _
    $region31: #{tpu_custom_call.1} parent=1 // pred_check_branch
      %79 = sbr.rel (0) target = $region33
    $region32: #{tpu_custom_call.1} parent=1 // pred_region
      %80 = dma.done [#allocation6], 512
    $region33: #{tpu_custom_call.1} parent=1 // pred_fallthru
      _
    // Predicated region
    $region34: #{tpu_custom_call.1} parent=1 // pred_check
      _
    $region35: #{tpu_custom_call.1} parent=1 // pred_check_branch
      %82 = sbr.rel (0) target = $region37
    $region36: #{tpu_custom_call.1} parent=1 // pred_region
      %83 = dma.done [#allocation9], 3072
    $region37: #{tpu_custom_call.1} parent=1 // pred_fallthru
      _
    // Predicated region
    $region38: #{tpu_custom_call.1} parent=1 // pred_check
      _
    $region39: #{tpu_custom_call.1} parent=1 // pred_check_branch
      %85 = sbr.rel (0) target = $region41
    $region40: #{tpu_custom_call.1} parent=1 // pred_region
      %86 = dma.done [#allocation9], 128
    $region41: #{tpu_custom_call.1} parent=1 // pred_fallthru
      _
    %v88 = vld [vmem:[#allocation2] sm:$0xf]
    %v89 = vld [vmem:[#allocation2 + $0x4] sm:$0xf]
    %v90 = vld [vmem:[#allocation2 + $0x8] sm:$0xf]
    %v91 = vld [vmem:[#allocation2 + $0xc] sm:$0xf]
    %v92 = vld [vmem:[#allocation2 + $0x10] sm:$0xf]
    %v93 = vld [vmem:[#allocation2 + $0x14] sm:$0xf]
    %v94 = vld [vmem:[#allocation2 + $0x18] sm:$0xf]
    %v95 = vld [vmem:[#allocation2 + $0x1c] sm:$0xf]
    %v96 = vld [vmem:[#allocation2 + $0x20] sm:$0xf]
    %v97 = vld [vmem:[#allocation2 + $0x24] sm:$0xf]
    %v98 = vld [vmem:[#allocation2 + $0x28] sm:$0xf]
    %v99 = vld [vmem:[#allocation2 + $0x2c] sm:$0xf]
    %v100 = vld [vmem:[#allocation2 + $0x30] sm:$0xf]
    %v101 = vld [vmem:[#allocation2 + $0x34] sm:$0xf]
    %v102 = vld [vmem:[#allocation2 + $0x38] sm:$0xf]
    %v103 = vld [vmem:[#allocation2 + $0x3c] sm:$0xf]
    %v104 = vld [vmem:[#allocation2 + $0x40] sm:$0xf]
    %v105 = vld [vmem:[#allocation2 + $0x44] sm:$0xf]
    %v106 = vld [vmem:[#allocation2 + $0x48] sm:$0xf]
    %v107 = vld [vmem:[#allocation2 + $0x4c] sm:$0xf]
    %v108 = vld [vmem:[#allocation2 + $0x50] sm:$0xf]
    %v109 = vld [vmem:[#allocation2 + $0x54] sm:$0xf]
    %v110 = vld [vmem:[#allocation2 + $0x58] sm:$0xf]
    %v111 = vld [vmem:[#allocation2 + $0x5c] sm:$0xf]
    %v112 = vld [vmem:[#allocation2 + $0x60] sm:$0xf]
    %v113 = vld [vmem:[#allocation2 + $0x64] sm:$0xf]
    %v114 = vld [vmem:[#allocation2 + $0x68] sm:$0xf]
    %v115 = vld [vmem:[#allocation2 + $0x6c] sm:$0xf]
    %v116 = vld [vmem:[#allocation2 + $0x70] sm:$0xf]
    %v117 = vld [vmem:[#allocation2 + $0x74] sm:$0xf]
    %v118 = vld [vmem:[#allocation2 + $0x78] sm:$0xf]
    %v119 = vld [vmem:[#allocation2 + $0x7c] sm:$0xf]
    %v120 = vld [vmem:[#allocation5] sm:$0xff]
    %v121 = vld [vmem:[#allocation5 + $0x8] sm:$0xff]
    %v122 = vld [vmem:[#allocation5 + $0x10] sm:$0xff]
    %v123 = vld [vmem:[#allocation5 + $0x18] sm:$0xff]
    %v124 = vld [vmem:[#allocation5 + $0x20] sm:$0xff]
    %v125 = vld [vmem:[#allocation5 + $0x28] sm:$0xff]
    %v126 = vld [vmem:[#allocation5 + $0x30] sm:$0xff]
    %v127 = vld [vmem:[#allocation5 + $0x38] sm:$0xff]
    %v128 = vld [vmem:[#allocation5 + $0x40] sm:$0xff]
    %v129 = vld [vmem:[#allocation5 + $0x48] sm:$0xff]
    %v130 = vld [vmem:[#allocation5 + $0x50] sm:$0xff]
    %v131 = vld [vmem:[#allocation5 + $0x58] sm:$0xff]
    %v132 = vld [vmem:[#allocation5 + $0x60] sm:$0xff]
    %v133 = vld [vmem:[#allocation5 + $0x68] sm:$0xff]
    %v134 = vld [vmem:[#allocation5 + $0x70] sm:$0xff]
    %v135 = vld [vmem:[#allocation5 + $0x78] sm:$0xff]
    %v136 = vld [vmem:[#allocation5 + $0x80] sm:$0xff]
    %v137 = vld [vmem:[#allocation5 + $0x88] sm:$0xff]
    %v138 = vld [vmem:[#allocation5 + $0x90] sm:$0xff]
    %v139 = vld [vmem:[#allocation5 + $0x98] sm:$0xff]
    %v140 = vld [vmem:[#allocation5 + $0xa0] sm:$0xff]
    %v141 = vld [vmem:[#allocation5 + $0xa8] sm:$0xff]
    %v142 = vld [vmem:[#allocation5 + $0xb0] sm:$0xff]
    %v143 = vld [vmem:[#allocation5 + $0xb8] sm:$0xff]
    %v144 = vld [vmem:[#allocation5 + $0xc0] sm:$0xff]
    %v145 = vld [vmem:[#allocation5 + $0xc8] sm:$0xff]
    %v146 = vld [vmem:[#allocation5 + $0xd0] sm:$0xff]
    %v147 = vld [vmem:[#allocation5 + $0xd8] sm:$0xff]
    %v148 = vld [vmem:[#allocation5 + $0xe0] sm:$0xff]
    %v149 = vld [vmem:[#allocation5 + $0xe8] sm:$0xff]
    %v150 = vld [vmem:[#allocation5 + $0xf0] sm:$0xff]
    %v151 = vld [vmem:[#allocation5 + $0xf8] sm:$0xff]
    %v152 = vld [vmem:[#allocation7] sm:$0xff]
    %v153 = vld [vmem:[#allocation7 + $0x8] sm:$0xff]
    %v154 = vld [vmem:[#allocation7 + $0x10] sm:$0xff]
    %v155 = vld [vmem:[#allocation7 + $0x18] sm:$0xff]
    %v156 = vld [vmem:[#allocation8] sm:$0xf]
    %v157 = vld [vmem:[#allocation8 + $0x4] sm:$0xf]
    %v158 = vld [vmem:[#allocation8 + $0x8] sm:$0xf]
    %v159 = vld [vmem:[#allocation8 + $0xc] sm:$0xf]
    %v160 = vld [vmem:[#allocation8 + $0x10] sm:$0xf]
    %v161 = vld [vmem:[#allocation8 + $0x14] sm:$0xf]
    %v162 = vld [vmem:[#allocation8 + $0x18] sm:$0xf]
    %v163 = vld [vmem:[#allocation8 + $0x1c] sm:$0xf]
    %v164 = vld [vmem:[#allocation8 + $0x20] sm:$0xf]
    %v165 = vld [vmem:[#allocation8 + $0x24] sm:$0xf]
    %v166 = vld [vmem:[#allocation8 + $0x28] sm:$0xf]
    %v167 = vld [vmem:[#allocation8 + $0x2c] sm:$0xf]
    %v168 = vld [vmem:[#allocation8 + $0x30] sm:$0xf]
    %v169 = vld [vmem:[#allocation8 + $0x34] sm:$0xf]
    %v170 = vld [vmem:[#allocation8 + $0x38] sm:$0xf]
    %v171 = vld [vmem:[#allocation8 + $0x3c] sm:$0xf]
    %v172 = vld [vmem:[#allocation8 + $0x40] sm:$0xf]
    %v173 = vld [vmem:[#allocation8 + $0x44] sm:$0xf]
    %v174 = vld [vmem:[#allocation8 + $0x48] sm:$0xf]
    %v175 = vld [vmem:[#allocation8 + $0x4c] sm:$0xf]
    %v176 = vld [vmem:[#allocation8 + $0x50] sm:$0xf]
    %v177 = vld [vmem:[#allocation8 + $0x54] sm:$0xf]
    %v178 = vld [vmem:[#allocation8 + $0x58] sm:$0xf]
    %v179 = vld [vmem:[#allocation8 + $0x5c] sm:$0xf]
    %v180 = vld [vmem:[#allocation8 + $0x60] sm:$0xf]
    %v181 = vld [vmem:[#allocation8 + $0x64] sm:$0xf]
    %v182 = vld [vmem:[#allocation8 + $0x68] sm:$0xf]
    %v183 = vld [vmem:[#allocation8 + $0x6c] sm:$0xf]
    %v184 = vld [vmem:[#allocation8 + $0x70] sm:$0xf]
    %v185 = vld [vmem:[#allocation8 + $0x74] sm:$0xf]
    %v186 = vld [vmem:[#allocation8 + $0x78] sm:$0xf]
    %v187 = vld [vmem:[#allocation8 + $0x7c] sm:$0xf]
    %v188 = vld [vmem:[#allocation8 + $0x80] sm:$0xf]
    %v189 = vld [vmem:[#allocation8 + $0x84] sm:$0xf]
    %v190 = vld [vmem:[#allocation8 + $0x88] sm:$0xf]
    %v191 = vld [vmem:[#allocation8 + $0x8c] sm:$0xf]
    %v192 = vld [vmem:[#allocation8 + $0x90] sm:$0xf]
    %v193 = vld [vmem:[#allocation8 + $0x94] sm:$0xf]
    %v194 = vld [vmem:[#allocation8 + $0x98] sm:$0xf]
    %v195 = vld [vmem:[#allocation8 + $0x9c] sm:$0xf]
    %v196 = vld [vmem:[#allocation8 + $0xa0] sm:$0xf]
    %v197 = vld [vmem:[#allocation8 + $0xa4] sm:$0xf]
    %v198 = vld [vmem:[#allocation8 + $0xa8] sm:$0xf]
    %v199 = vld [vmem:[#allocation8 + $0xac] sm:$0xf]
    %v200 = vld [vmem:[#allocation8 + $0xb0] sm:$0xf]
    %v201 = vld [vmem:[#allocation8 + $0xb4] sm:$0xf]
    %v202 = vld [vmem:[#allocation8 + $0xb8] sm:$0xf]
    %v203 = vld [vmem:[#allocation8 + $0xbc] sm:$0xf]
    %v204 = vld [vmem:[#allocation10] sm:$0x1]
    %v205 = vld [vmem:[#allocation10 + $0x1] sm:$0x1]
    %v206 = vld [vmem:[#allocation10 + $0x2] sm:$0x1]
    %v207 = vld [vmem:[#allocation10 + $0x3] sm:$0x1]
    %v208 = vld [vmem:[#allocation10 + $0x4] sm:$0x1]
    %v241 = vunpack.c.l.b16 %v88
    %v242 = vunpack.c.l.b16 %v89
    %v243 = vunpack.c.l.b16 %v90
    %v244 = vunpack.c.l.b16 %v91
    %v245 = vunpack.c.l.b16 %v92
    %v246 = vunpack.c.l.b16 %v93
    %v247 = vunpack.c.l.b16 %v94
    %v248 = vunpack.c.l.b16 %v95
    %v249 = vunpack.c.l.b16 %v96
    %v250 = vunpack.c.l.b16 %v97
    %v251 = vunpack.c.l.b16 %v98
    %v252 = vunpack.c.l.b16 %v99
    %v253 = vunpack.c.l.b16 %v100
    %v254 = vunpack.c.l.b16 %v101
    %v255 = vunpack.c.l.b16 %v102
    %v256 = vunpack.c.l.b16 %v103
    %v257 = vunpack.c.l.b16 %v104
    %v258 = vunpack.c.l.b16 %v105
    %v259 = vunpack.c.l.b16 %v106
    %v260 = vunpack.c.l.b16 %v107
    %v261 = vunpack.c.l.b16 %v108
    %v262 = vunpack.c.l.b16 %v109
    %v263 = vunpack.c.l.b16 %v110
    %v264 = vunpack.c.l.b16 %v111
    %v265 = vunpack.c.l.b16 %v112
    %v266 = vunpack.c.l.b16 %v113
    %v267 = vunpack.c.l.b16 %v114
    %v268 = vunpack.c.l.b16 %v115
    %v269 = vunpack.c.l.b16 %v116
    %v270 = vunpack.c.l.b16 %v117
    %v271 = vunpack.c.l.b16 %v118
    %v272 = vunpack.c.l.b16 %v119
    %v273 = vpack.c.b16 %v242, %v241
    %v274 = vpack.c.b16 %v244, %v243
    %v275 = vpack.c.b16 %v246, %v245
    %v276 = vpack.c.b16 %v248, %v247
    %v277 = vpack.c.b16 %v250, %v249
    %v278 = vpack.c.b16 %v252, %v251
    %v279 = vpack.c.b16 %v254, %v253
    %v280 = vpack.c.b16 %v256, %v255
    %v281 = vpack.c.b16 %v258, %v257
    %v282 = vpack.c.b16 %v260, %v259
    %v283 = vpack.c.b16 %v262, %v261
    %v284 = vpack.c.b16 %v264, %v263
    %v285 = vpack.c.b16 %v266, %v265
    %v286 = vpack.c.b16 %v268, %v267
    %v287 = vpack.c.b16 %v270, %v269
    %v288 = vpack.c.b16 %v272, %v271
    %v321 = vunpack.c.l.b16 %v156
    %v322 = vunpack.c.l.b16 %v157
    %v323 = vunpack.c.l.b16 %v158
    %v324 = vunpack.c.l.b16 %v159
    %v325 = vunpack.c.l.b16 %v160
    %v326 = vunpack.c.l.b16 %v161
    %v327 = vunpack.c.l.b16 %v162
    %v328 = vunpack.c.l.b16 %v163
    %v329 = vunpack.c.l.b16 %v164
    %v330 = vunpack.c.l.b16 %v165
    %v331 = vunpack.c.l.b16 %v166
    %v332 = vunpack.c.l.b16 %v167
    %v333 = vunpack.c.l.b16 %v168
    %v334 = vunpack.c.l.b16 %v169
    %v335 = vunpack.c.l.b16 %v170
    %v336 = vunpack.c.l.b16 %v171
    %v337 = vpack.c.b16 %v322, %v321
    %v338 = vpack.c.b16 %v324, %v323
    %v339 = vpack.c.b16 %v326, %v325
    %v340 = vpack.c.b16 %v328, %v327
    %v341 = vpack.c.b16 %v330, %v329
    %v342 = vpack.c.b16 %v332, %v331
    %v343 = vpack.c.b16 %v334, %v333
    %v344 = vpack.c.b16 %v336, %v335
    %353 = vmatprep.subr.bf16.mxu0 0
    %354 = vmatpush1.bf16.msra.mxu0 %v344
    %355 = vmatprep.subr.bf16.mxu0 0
    %356 = vmatpush1.bf16.msra.mxu0 %v343
    %357 = vmatprep.subr.bf16.mxu0 0
    %358 = vmatpush1.bf16.msra.mxu0 %v342
    %359 = vmatprep.subr.bf16.mxu0 0
    %360 = vmatpush1.bf16.msra.mxu0 %v341
    %361 = vmatprep.subr.bf16.mxu0 0
    %362 = vmatpush1.bf16.msra.mxu0 %v340
    %363 = vmatprep.subr.bf16.mxu0 0
    %364 = vmatpush1.bf16.msra.mxu0 %v339
    %365 = vmatprep.subr.bf16.mxu0 0
    %366 = vmatpush1.bf16.msra.mxu0 %v338
    %367 = vmatprep.subr.bf16.mxu0 0
    %368 = vmatpush1.bf16.msra.mxu0 %v337
    %369 = vmatprep.subr.bf16.mxu0 0
    %370 = vmatpush2.bf16.msra.mxu0 0
    %371 = vmatprep.subr.bf16.mxu0 0
    %372 = vmatpush2.bf16.msra.mxu0 0
    %373 = vmatprep.subr.bf16.mxu0 0
    %374 = vmatpush2.bf16.msra.mxu0 0
    %375 = vmatprep.subr.bf16.mxu0 0
    %376 = vmatpush2.bf16.msra.mxu0 0
    %377 = vmatprep.subr.bf16.mxu0 0
    %378 = vmatpush2.bf16.msra.mxu0 0
    %379 = vmatprep.subr.bf16.mxu0 0
    %380 = vmatpush2.bf16.msra.mxu0 0
    %381 = vmatprep.subr.bf16.mxu0 0
    %382 = vmatpush2.bf16.msra.mxu0 0
    %383 = vmatprep.subr.bf16.mxu0 0
    %384 = vmatpush2.bf16.msra.mxu0 0
    %385 = vmatprep.mubr.bf16.mxu0 0
    %386 = vmatmul.mubr.bf16.gmra.mxu0 %v273
    %v387 = vpop.f32.mrf.mxu0
    %v388 = vadd.f32 0.0, %v387
    %v389 = vpop.f32.mrf.mxu0
    %v390 = vpop.f32.mrf.mxu0
    %v391 = vadd.f32 0.0, %v390
    %v392 = vpop.f32.mrf.mxu0
    %393 = vmatprep.mubr.bf16.mxu0 0
    %394 = vmatmul.mubr.bf16.gmra.mxu0 %v274
    %v395 = vpop.f32.mrf.mxu0
    %v396 = vadd.f32 0.0, %v395
    %v397 = vpop.f32.mrf.mxu0
    %v398 = vpop.f32.mrf.mxu0
    %v399 = vadd.f32 0.0, %v398
    %v400 = vpop.f32.mrf.mxu0
    %401 = vmatprep.mubr.bf16.mxu0 0
    %402 = vmatmul.mubr.bf16.gmra.mxu0 %v275
    %v403 = vpop.f32.mrf.mxu0
    %v404 = vadd.f32 0.0, %v403
    %v405 = vpop.f32.mrf.mxu0
    %v406 = vpop.f32.mrf.mxu0
    %v407 = vadd.f32 0.0, %v406
    %v408 = vpop.f32.mrf.mxu0
    %409 = vmatprep.mubr.bf16.mxu0 0
    %410 = vmatmul.mubr.bf16.gmra.mxu0 %v276
    %v411 = vpop.f32.mrf.mxu0
    %v412 = vadd.f32 0.0, %v411
    %v413 = vpop.f32.mrf.mxu0
    %v414 = vpop.f32.mrf.mxu0
    %v415 = vadd.f32 0.0, %v414
    %v416 = vpop.f32.mrf.mxu0
    %417 = vmatprep.mubr.bf16.mxu0 0
    %418 = vmatmul.mubr.bf16.gmra.mxu0 %v277
    %v419 = vpop.f32.mrf.mxu0
    %v420 = vadd.f32 0.0, %v419
    %v421 = vpop.f32.mrf.mxu0
    %v422 = vpop.f32.mrf.mxu0
    %v423 = vadd.f32 0.0, %v422
    %v424 = vpop.f32.mrf.mxu0
    %425 = vmatprep.mubr.bf16.mxu0 0
    %426 = vmatmul.mubr.bf16.gmra.mxu0 %v278
    %v427 = vpop.f32.mrf.mxu0
    %v428 = vadd.f32 0.0, %v427
    %v429 = vpop.f32.mrf.mxu0
    %v430 = vpop.f32.mrf.mxu0
    %v431 = vadd.f32 0.0, %v430
    %v432 = vpop.f32.mrf.mxu0
    %433 = vmatprep.mubr.bf16.mxu0 0
    %434 = vmatmul.mubr.bf16.gmra.mxu0 %v279
    %v435 = vpop.f32.mrf.mxu0
    %v436 = vadd.f32 0.0, %v435
    %v437 = vpop.f32.mrf.mxu0
    %v438 = vpop.f32.mrf.mxu0
    %v439 = vadd.f32 0.0, %v438
    %v440 = vpop.f32.mrf.mxu0
    %441 = vmatprep.mubr.bf16.mxu0 0
    %442 = vmatmul.mubr.bf16.gmra.mxu0 %v280
    %v443 = vpop.f32.mrf.mxu0
    %v444 = vadd.f32 0.0, %v443
    %v445 = vpop.f32.mrf.mxu0
    %v446 = vpop.f32.mrf.mxu0
    %v447 = vadd.f32 0.0, %v446
    %v448 = vpop.f32.mrf.mxu0
    %449 = vmatprep.mubr.bf16.mxu0 0
    %450 = vmatmul.mubr.bf16.gmra.mxu0 %v281
    %v451 = vpop.f32.mrf.mxu0
    %v452 = vadd.f32 0.0, %v451
    %v453 = vpop.f32.mrf.mxu0
    %v454 = vpop.f32.mrf.mxu0
    %v455 = vadd.f32 0.0, %v454
    %v456 = vpop.f32.mrf.mxu0
    %457 = vmatprep.mubr.bf16.mxu0 0
    %458 = vmatmul.mubr.bf16.gmra.mxu0 %v282
    %v459 = vpop.f32.mrf.mxu0
    %v460 = vadd.f32 0.0, %v459
    %v461 = vpop.f32.mrf.mxu0
    %v462 = vpop.f32.mrf.mxu0
    %v463 = vadd.f32 0.0, %v462
    %v464 = vpop.f32.mrf.mxu0
    %465 = vmatprep.mubr.bf16.mxu0 0
    %466 = vmatmul.mubr.bf16.gmra.mxu0 %v283
    %v467 = vpop.f32.mrf.mxu0
    %v468 = vadd.f32 0.0, %v467
    %v469 = vpop.f32.mrf.mxu0
    %v470 = vpop.f32.mrf.mxu0
    %v471 = vadd.f32 0.0, %v470
    %v472 = vpop.f32.mrf.mxu0
    %473 = vmatprep.mubr.bf16.mxu0 0
    %474 = vmatmul.mubr.bf16.gmra.mxu0 %v284
    %v475 = vpop.f32.mrf.mxu0
    %v476 = vadd.f32 0.0, %v475
    %v477 = vpop.f32.mrf.mxu0
    %v478 = vpop.f32.mrf.mxu0
    %v479 = vadd.f32 0.0, %v478
    %v480 = vpop.f32.mrf.mxu0
    %481 = vmatprep.mubr.bf16.mxu0 0
    %482 = vmatmul.mubr.bf16.gmra.mxu0 %v285
    %v483 = vpop.f32.mrf.mxu0
    %v484 = vadd.f32 0.0, %v483
    %v485 = vpop.f32.mrf.mxu0
    %v486 = vpop.f32.mrf.mxu0
    %v487 = vadd.f32 0.0, %v486
    %v488 = vpop.f32.mrf.mxu0
    %489 = vmatprep.mubr.bf16.mxu0 0
    %490 = vmatmul.mubr.bf16.gmra.mxu0 %v286
    %v491 = vpop.f32.mrf.mxu0
    %v492 = vadd.f32 0.0, %v491
    %v493 = vpop.f32.mrf.mxu0
    %v494 = vpop.f32.mrf.mxu0
    %v495 = vadd.f32 0.0, %v494
    %v496 = vpop.f32.mrf.mxu0
    %497 = vmatprep.mubr.bf16.mxu0 0
    %498 = vmatmul.mubr.bf16.gmra.mxu0 %v287
    %v499 = vpop.f32.mrf.mxu0
    %v500 = vadd.f32 0.0, %v499
    %v501 = vpop.f32.mrf.mxu0
    %v502 = vpop.f32.mrf.mxu0
    %v503 = vadd.f32 0.0, %v502
    %v504 = vpop.f32.mrf.mxu0
    %505 = vmatprep.mubr.bf16.mxu0 0
    %506 = vmatmul.mubr.bf16.gmra.mxu0 %v288
    %v507 = vpop.f32.mrf.mxu0
    %v508 = vadd.f32 0.0, %v507
    %v509 = vpop.f32.mrf.mxu0
    %v510 = vpop.f32.mrf.mxu0
    %v511 = vadd.f32 0.0, %v510
    %v512 = vpop.f32.mrf.mxu0
    %513 = vdwg.mxu0
    %v514 = vpack.c.bf16 %v391, %v388
    %v515 = vpack.c.bf16 %v399, %v396
    %v516 = vpack.c.bf16 %v407, %v404
    %v517 = vpack.c.bf16 %v415, %v412
    %v518 = vpack.c.bf16 %v423, %v420
    %v519 = vpack.c.bf16 %v431, %v428
    %v520 = vpack.c.bf16 %v439, %v436
    %v521 = vpack.c.bf16 %v447, %v444
    %v522 = vpack.c.bf16 %v455, %v452
    %v523 = vpack.c.bf16 %v463, %v460
    %v524 = vpack.c.bf16 %v471, %v468
    %v525 = vpack.c.bf16 %v479, %v476
    %v526 = vpack.c.bf16 %v487, %v484
    %v527 = vpack.c.bf16 %v495, %v492
    %v528 = vpack.c.bf16 %v503, %v500
    %v529 = vpack.c.bf16 %v511, %v508
    %v530 = vlaneseq
    %v531 = vshrl.u32 %v530, 7
    %v532 = vsub.s32 0, %v531
    %v533 = vrot.slane %v204, %v532
    %v566 = vunpack.c.l.b16 %v120
    %v567 = vunpack.c.h.b16 %v120
    %v568 = vunpack.c.l.b16 %v121
    %v569 = vunpack.c.h.b16 %v121
    %v570 = vunpack.c.l.b16 %v122
    %v571 = vunpack.c.h.b16 %v122
    %v572 = vunpack.c.l.b16 %v123
    %v573 = vunpack.c.h.b16 %v123
    %v574 = vunpack.c.l.b16 %v124
    %v575 = vunpack.c.h.b16 %v124
    %v576 = vunpack.c.l.b16 %v125
    %v577 = vunpack.c.h.b16 %v125
    %v578 = vunpack.c.l.b16 %v126
    %v579 = vunpack.c.h.b16 %v126
    %v580 = vunpack.c.l.b16 %v127
    %v581 = vunpack.c.h.b16 %v127
    %v582 = vunpack.c.l.b16 %v128
    %v583 = vunpack.c.h.b16 %v128
    %v584 = vunpack.c.l.b16 %v129
    %v585 = vunpack.c.h.b16 %v129
    %v586 = vunpack.c.l.b16 %v130
    %v587 = vunpack.c.h.b16 %v130
    %v588 = vunpack.c.l.b16 %v131
    %v589 = vunpack.c.h.b16 %v131
    %v590 = vunpack.c.l.b16 %v132
    %v591 = vunpack.c.h.b16 %v132
    %v592 = vunpack.c.l.b16 %v133
    %v593 = vunpack.c.h.b16 %v133
    %v594 = vunpack.c.l.b16 %v134
    %v595 = vunpack.c.h.b16 %v134
    %v596 = vunpack.c.l.b16 %v135
    %v597 = vunpack.c.h.b16 %v135
    %v598 = vunpack.c.l.b16 %v136
    %v599 = vunpack.c.h.b16 %v136
    %v600 = vunpack.c.l.b16 %v137
    %v601 = vunpack.c.h.b16 %v137
    %v602 = vunpack.c.l.b16 %v138
    %v603 = vunpack.c.h.b16 %v138
    %v604 = vunpack.c.l.b16 %v139
    %v605 = vunpack.c.h.b16 %v139
    %v606 = vunpack.c.l.b16 %v140
    %v607 = vunpack.c.h.b16 %v140
    %v608 = vunpack.c.l.b16 %v141
    %v609 = vunpack.c.h.b16 %v141
    %v610 = vunpack.c.l.b16 %v142
    %v611 = vunpack.c.h.b16 %v142
    %v612 = vunpack.c.l.b16 %v143
    %v613 = vunpack.c.h.b16 %v143
    %v614 = vunpack.c.l.b16 %v144
    %v615 = vunpack.c.h.b16 %v144
    %v616 = vunpack.c.l.b16 %v145
    %v617 = vunpack.c.h.b16 %v145
    %v618 = vunpack.c.l.b16 %v146
    %v619 = vunpack.c.h.b16 %v146
    %v620 = vunpack.c.l.b16 %v147
    %v621 = vunpack.c.h.b16 %v147
    %v622 = vunpack.c.l.b16 %v148
    %v623 = vunpack.c.h.b16 %v148
    %v624 = vunpack.c.l.b16 %v149
    %v625 = vunpack.c.h.b16 %v149
    %v626 = vunpack.c.l.b16 %v150
    %v627 = vunpack.c.h.b16 %v150
    %v628 = vunpack.c.l.b16 %v151
    %v629 = vunpack.c.h.b16 %v151
    %v630 = vpack.c.b16 %v568, %v566
    %v631 = vpack.c.b16 %v569, %v567
    %v632 = vpack.c.b16 %v572, %v570
    %v633 = vpack.c.b16 %v573, %v571
    %v634 = vpack.c.b16 %v576, %v574
    %v635 = vpack.c.b16 %v577, %v575
    %v636 = vpack.c.b16 %v580, %v578
    %v637 = vpack.c.b16 %v581, %v579
    %v638 = vpack.c.b16 %v584, %v582
    %v639 = vpack.c.b16 %v585, %v583
    %v640 = vpack.c.b16 %v588, %v586
    %v641 = vpack.c.b16 %v589, %v587
    %v642 = vpack.c.b16 %v592, %v590
    %v643 = vpack.c.b16 %v593, %v591
    %v644 = vpack.c.b16 %v596, %v594
    %v645 = vpack.c.b16 %v597, %v595
    %v646 = vpack.c.b16 %v600, %v598
    %v647 = vpack.c.b16 %v601, %v599
    %v648 = vpack.c.b16 %v604, %v602
    %v649 = vpack.c.b16 %v605, %v603
    %v650 = vpack.c.b16 %v608, %v606
    %v651 = vpack.c.b16 %v609, %v607
    %v652 = vpack.c.b16 %v612, %v610
    %v653 = vpack.c.b16 %v613, %v611
    %v654 = vpack.c.b16 %v616, %v614
    %v655 = vpack.c.b16 %v617, %v615
    %v656 = vpack.c.b16 %v620, %v618
    %v657 = vpack.c.b16 %v621, %v619
    %v658 = vpack.c.b16 %v624, %v622
    %v659 = vpack.c.b16 %v625, %v623
    %v660 = vpack.c.b16 %v628, %v626
    %v661 = vpack.c.b16 %v629, %v627
    %694 = vmatprep.subr.bf16.mxu0 0
    %695 = vmatpush1.bf16.msra.mxu0 %v521
    %696 = vmatprep.subr.bf16.mxu0 0
    %697 = vmatpush1.bf16.msra.mxu0 %v520
    %698 = vmatprep.subr.bf16.mxu0 0
    %699 = vmatpush1.bf16.msra.mxu0 %v519
    %700 = vmatprep.subr.bf16.mxu0 0
    %701 = vmatpush1.bf16.msra.mxu0 %v518
    %702 = vmatprep.subr.bf16.mxu0 0
    %703 = vmatpush1.bf16.msra.mxu0 %v517
    %704 = vmatprep.subr.bf16.mxu0 0
    %705 = vmatpush1.bf16.msra.mxu0 %v516
    %706 = vmatprep.subr.bf16.mxu0 0
    %707 = vmatpush1.bf16.msra.mxu0 %v515
    %708 = vmatprep.subr.bf16.mxu0 0
    %709 = vmatpush1.bf16.msra.mxu0 %v514
    %710 = vmatprep.subr.bf16.mxu0 0
    %711 = vmatpush2.bf16.msra.mxu0 %v529
    %712 = vmatprep.subr.bf16.mxu0 0
    %713 = vmatpush2.bf16.msra.mxu0 %v528
    %714 = vmatprep.subr.bf16.mxu0 0
    %715 = vmatpush2.bf16.msra.mxu0 %v527
    %716 = vmatprep.subr.bf16.mxu0 0
    %717 = vmatpush2.bf16.msra.mxu0 %v526
    %718 = vmatprep.subr.bf16.mxu0 0
    %719 = vmatpush2.bf16.msra.mxu0 %v525
    %720 = vmatprep.subr.bf16.mxu0 0
    %721 = vmatpush2.bf16.msra.mxu0 %v524
    %722 = vmatprep.subr.bf16.mxu0 0
    %723 = vmatpush2.bf16.msra.mxu0 %v523
    %724 = vmatprep.subr.bf16.mxu0 0
    %725 = vmatpush2.bf16.msra.mxu0 %v522
    %726 = vmatprep.mubr.bf16.mxu0 %v631
    %727 = vmatmul.mubr.bf16.gmra.mxu0 %v630
    %v728 = vpop.f32.mrf.mxu0
    %v729 = vadd.f32 %v533, %v728
    %v730 = vpop.f32.mrf.mxu0
    %v731 = vpop.f32.mrf.mxu0
    %v732 = vadd.f32 %v533, %v731
    %v733 = vpop.f32.mrf.mxu0
    %734 = vmatprep.mubr.bf16.mxu0 %v633
    %735 = vmatmul.mubr.bf16.gmra.mxu0 %v632
    %v736 = vpop.f32.mrf.mxu0
    %v737 = vadd.f32 %v533, %v736
    %v738 = vpop.f32.mrf.mxu0
    %v739 = vpop.f32.mrf.mxu0
    %v740 = vadd.f32 %v533, %v739
    %v741 = vpop.f32.mrf.mxu0
    %742 = vmatprep.mubr.bf16.mxu0 %v635
    %743 = vmatmul.mubr.bf16.gmra.mxu0 %v634
    %v744 = vpop.f32.mrf.mxu0
    %v745 = vadd.f32 %v533, %v744
    %v746 = vpop.f32.mrf.mxu0
    %v747 = vpop.f32.mrf.mxu0
    %v748 = vadd.f32 %v533, %v747
    %v749 = vpop.f32.mrf.mxu0
    %750 = vmatprep.mubr.bf16.mxu0 %v637
    %751 = vmatmul.mubr.bf16.gmra.mxu0 %v636
    %v752 = vpop.f32.mrf.mxu0
    %v753 = vadd.f32 %v533, %v752
    %v754 = vpop.f32.mrf.mxu0
    %v755 = vpop.f32.mrf.mxu0
    %v756 = vadd.f32 %v533, %v755
    %v757 = vpop.f32.mrf.mxu0
    %758 = vmatprep.mubr.bf16.mxu0 %v639
    %759 = vmatmul.mubr.bf16.gmra.mxu0 %v638
    %v760 = vpop.f32.mrf.mxu0
    %v761 = vadd.f32 %v533, %v760
    %v762 = vpop.f32.mrf.mxu0
    %v763 = vpop.f32.mrf.mxu0
    %v764 = vadd.f32 %v533, %v763
    %v765 = vpop.f32.mrf.mxu0
    %766 = vmatprep.mubr.bf16.mxu0 %v641
    %767 = vmatmul.mubr.bf16.gmra.mxu0 %v640
    %v768 = vpop.f32.mrf.mxu0
    %v769 = vadd.f32 %v533, %v768
    %v770 = vpop.f32.mrf.mxu0
    %v771 = vpop.f32.mrf.mxu0
    %v772 = vadd.f32 %v533, %v771
    %v773 = vpop.f32.mrf.mxu0
    %774 = vmatprep.mubr.bf16.mxu0 %v643
    %775 = vmatmul.mubr.bf16.gmra.mxu0 %v642
    %v776 = vpop.f32.mrf.mxu0
    %v777 = vadd.f32 %v533, %v776
    %v778 = vpop.f32.mrf.mxu0
    %v779 = vpop.f32.mrf.mxu0
    %v780 = vadd.f32 %v533, %v779
    %v781 = vpop.f32.mrf.mxu0
    %782 = vmatprep.mubr.bf16.mxu0 %v645
    %783 = vmatmul.mubr.bf16.gmra.mxu0 %v644
    %v784 = vpop.f32.mrf.mxu0
    %v785 = vadd.f32 %v533, %v784
    %v786 = vpop.f32.mrf.mxu0
    %v787 = vpop.f32.mrf.mxu0
    %v788 = vadd.f32 %v533, %v787
    %v789 = vpop.f32.mrf.mxu0
    %790 = vmatprep.mubr.bf16.mxu0 %v647
    %791 = vmatmul.mubr.bf16.gmra.mxu0 %v646
    %v792 = vpop.f32.mrf.mxu0
    %v793 = vadd.f32 %v533, %v792
    %v794 = vpop.f32.mrf.mxu0
    %v795 = vpop.f32.mrf.mxu0
    %v796 = vadd.f32 %v533, %v795
    %v797 = vpop.f32.mrf.mxu0
    %798 = vmatprep.mubr.bf16.mxu0 %v649
    %799 = vmatmul.mubr.bf16.gmra.mxu0 %v648
    %v800 = vpop.f32.mrf.mxu0
    %v801 = vadd.f32 %v533, %v800
    %v802 = vpop.f32.mrf.mxu0
    %v803 = vpop.f32.mrf.mxu0
    %v804 = vadd.f32 %v533, %v803
    %v805 = vpop.f32.mrf.mxu0
    %806 = vmatprep.mubr.bf16.mxu0 %v651
    %807 = vmatmul.mubr.bf16.gmra.mxu0 %v650
    %v808 = vpop.f32.mrf.mxu0
    %v809 = vadd.f32 %v533, %v808
    %v810 = vpop.f32.mrf.mxu0
    %v811 = vpop.f32.mrf.mxu0
    %v812 = vadd.f32 %v533, %v811
    %v813 = vpop.f32.mrf.mxu0
    %814 = vmatprep.mubr.bf16.mxu0 %v653
    %815 = vmatmul.mubr.bf16.gmra.mxu0 %v652
    %v816 = vpop.f32.mrf.mxu0
    %v817 = vadd.f32 %v533, %v816
    %v818 = vpop.f32.mrf.mxu0
    %v819 = vpop.f32.mrf.mxu0
    %v820 = vadd.f32 %v533, %v819
    %v821 = vpop.f32.mrf.mxu0
    %822 = vmatprep.mubr.bf16.mxu0 %v655
    %823 = vmatmul.mubr.bf16.gmra.mxu0 %v654
    %v824 = vpop.f32.mrf.mxu0
    %v825 = vadd.f32 %v533, %v824
    %v826 = vpop.f32.mrf.mxu0
    %v827 = vpop.f32.mrf.mxu0
    %v828 = vadd.f32 %v533, %v827
    %v829 = vpop.f32.mrf.mxu0
    %830 = vmatprep.mubr.bf16.mxu0 %v657
    %831 = vmatmul.mubr.bf16.gmra.mxu0 %v656
    %v832 = vpop.f32.mrf.mxu0
    %v833 = vadd.f32 %v533, %v832
    %v834 = vpop.f32.mrf.mxu0
    %v835 = vpop.f32.mrf.mxu0
    %v836 = vadd.f32 %v533, %v835
    %v837 = vpop.f32.mrf.mxu0
    %838 = vmatprep.mubr.bf16.mxu0 %v659
    %839 = vmatmul.mubr.bf16.gmra.mxu0 %v658
    %v840 = vpop.f32.mrf.mxu0
    %v841 = vadd.f32 %v533, %v840
    %v842 = vpop.f32.mrf.mxu0
    %v843 = vpop.f32.mrf.mxu0
    %v844 = vadd.f32 %v533, %v843
    %v845 = vpop.f32.mrf.mxu0
    %846 = vmatprep.mubr.bf16.mxu0 %v661
    %847 = vmatmul.mubr.bf16.gmra.mxu0 %v660
    %v848 = vpop.f32.mrf.mxu0
    %v849 = vadd.f32 %v533, %v848
    %v850 = vpop.f32.mrf.mxu0
    %v851 = vpop.f32.mrf.mxu0
    %v852 = vadd.f32 %v533, %v851
    %v853 = vpop.f32.mrf.mxu0
    %854 = vdwg.mxu0
    %v855 = vmax.f32 %v729, 0.0
    %v856 = vmax.f32 %v732, 0.0
    %v857 = vmax.f32 %v737, 0.0
    %v858 = vmax.f32 %v740, 0.0
    %v859 = vmax.f32 %v745, 0.0
    %v860 = vmax.f32 %v748, 0.0
    %v861 = vmax.f32 %v753, 0.0
    %v862 = vmax.f32 %v756, 0.0
    %v863 = vmax.f32 %v761, 0.0
    %v864 = vmax.f32 %v764, 0.0
    %v865 = vmax.f32 %v769, 0.0
    %v866 = vmax.f32 %v772, 0.0
    %v867 = vmax.f32 %v777, 0.0
    %v868 = vmax.f32 %v780, 0.0
    %v869 = vmax.f32 %v785, 0.0
    %v870 = vmax.f32 %v788, 0.0
    %v871 = vmax.f32 %v793, 0.0
    %v872 = vmax.f32 %v796, 0.0
    %v873 = vmax.f32 %v801, 0.0
    %v874 = vmax.f32 %v804, 0.0
    %v875 = vmax.f32 %v809, 0.0
    %v876 = vmax.f32 %v812, 0.0
    %v877 = vmax.f32 %v817, 0.0
    %v878 = vmax.f32 %v820, 0.0
    %v879 = vmax.f32 %v825, 0.0
    %v880 = vmax.f32 %v828, 0.0
    %v881 = vmax.f32 %v833, 0.0
    %v882 = vmax.f32 %v836, 0.0
    %v883 = vmax.f32 %v841, 0.0
    %v884 = vmax.f32 %v844, 0.0
    %v885 = vmax.f32 %v849, 0.0
    %v886 = vmax.f32 %v852, 0.0
    %v887 = vpack.c.bf16 %v856, %v855
    %v888 = vpack.c.bf16 %v858, %v857
    %v889 = vpack.c.bf16 %v860, %v859
    %v890 = vpack.c.bf16 %v862, %v861
    %v891 = vpack.c.bf16 %v864, %v863
    %v892 = vpack.c.bf16 %v866, %v865
    %v893 = vpack.c.bf16 %v868, %v867
    %v894 = vpack.c.bf16 %v870, %v869
    %v895 = vpack.c.bf16 %v872, %v871
    %v896 = vpack.c.bf16 %v874, %v873
    %v897 = vpack.c.bf16 %v876, %v875
    %v898 = vpack.c.bf16 %v878, %v877
    %v899 = vpack.c.bf16 %v880, %v879
    %v900 = vpack.c.bf16 %v882, %v881
    %v901 = vpack.c.bf16 %v884, %v883
    %v902 = vpack.c.bf16 %v886, %v885
    %v919 = vunpack.c.l.b16 %v172
    %v920 = vunpack.c.l.b16 %v173
    %v921 = vunpack.c.l.b16 %v174
    %v922 = vunpack.c.l.b16 %v175
    %v923 = vunpack.c.l.b16 %v176
    %v924 = vunpack.c.l.b16 %v177
    %v925 = vunpack.c.l.b16 %v178
    %v926 = vunpack.c.l.b16 %v179
    %v927 = vunpack.c.l.b16 %v180
    %v928 = vunpack.c.l.b16 %v181
    %v929 = vunpack.c.l.b16 %v182
    %v930 = vunpack.c.l.b16 %v183
    %v931 = vunpack.c.l.b16 %v184
    %v932 = vunpack.c.l.b16 %v185
    %v933 = vunpack.c.l.b16 %v186
    %v934 = vunpack.c.l.b16 %v187
    %v935 = vpack.c.b16 %v920, %v919
    %v936 = vpack.c.b16 %v922, %v921
    %v937 = vpack.c.b16 %v924, %v923
    %v938 = vpack.c.b16 %v926, %v925
    %v939 = vpack.c.b16 %v928, %v927
    %v940 = vpack.c.b16 %v930, %v929
    %v941 = vpack.c.b16 %v932, %v931
    %v942 = vpack.c.b16 %v934, %v933
    %951 = vmatprep.subr.bf16.mxu0 0
    %952 = vmatpush1.bf16.msra.mxu0 %v942
    %953 = vmatprep.subr.bf16.mxu0 0
    %954 = vmatpush1.bf16.msra.mxu0 %v941
    %955 = vmatprep.subr.bf16.mxu0 0
    %956 = vmatpush1.bf16.msra.mxu0 %v940
    %957 = vmatprep.subr.bf16.mxu0 0
    %958 = vmatpush1.bf16.msra.mxu0 %v939
    %959 = vmatprep.subr.bf16.mxu0 0
    %960 = vmatpush1.bf16.msra.mxu0 %v938
    %961 = vmatprep.subr.bf16.mxu0 0
    %962 = vmatpush1.bf16.msra.mxu0 %v937
    %963 = vmatprep.subr.bf16.mxu0 0
    %964 = vmatpush1.bf16.msra.mxu0 %v936
    %965 = vmatprep.subr.bf16.mxu0 0
    %966 = vmatpush1.bf16.msra.mxu0 %v935
    %967 = vmatprep.subr.bf16.mxu0 0
    %968 = vmatpush2.bf16.msra.mxu0 0
    %969 = vmatprep.subr.bf16.mxu0 0
    %970 = vmatpush2.bf16.msra.mxu0 0
    %971 = vmatprep.subr.bf16.mxu0 0
    %972 = vmatpush2.bf16.msra.mxu0 0
    %973 = vmatprep.subr.bf16.mxu0 0
    %974 = vmatpush2.bf16.msra.mxu0 0
    %975 = vmatprep.subr.bf16.mxu0 0
    %976 = vmatpush2.bf16.msra.mxu0 0
    %977 = vmatprep.subr.bf16.mxu0 0
    %978 = vmatpush2.bf16.msra.mxu0 0
    %979 = vmatprep.subr.bf16.mxu0 0
    %980 = vmatpush2.bf16.msra.mxu0 0
    %981 = vmatprep.subr.bf16.mxu0 0
    %982 = vmatpush2.bf16.msra.mxu0 0
    %983 = vmatprep.mubr.bf16.mxu0 0
    %984 = vmatmul.mubr.bf16.gmra.mxu0 %v887
    %v985 = vpop.f32.mrf.mxu0
    %v986 = vadd.f32 0.0, %v985
    %v987 = vpop.f32.mrf.mxu0
    %v988 = vpop.f32.mrf.mxu0
    %v989 = vadd.f32 0.0, %v988
    %v990 = vpop.f32.mrf.mxu0
    %991 = vmatprep.mubr.bf16.mxu0 0
    %992 = vmatmul.mubr.bf16.gmra.mxu0 %v888
    %v993 = vpop.f32.mrf.mxu0
    %v994 = vadd.f32 0.0, %v993
    %v995 = vpop.f32.mrf.mxu0
    %v996 = vpop.f32.mrf.mxu0
    %v997 = vadd.f32 0.0, %v996
    %v998 = vpop.f32.mrf.mxu0
    %999 = vmatprep.mubr.bf16.mxu0 0
    %1000 = vmatmul.mubr.bf16.gmra.mxu0 %v889
    %v1001 = vpop.f32.mrf.mxu0
    %v1002 = vadd.f32 0.0, %v1001
    %v1003 = vpop.f32.mrf.mxu0
    %v1004 = vpop.f32.mrf.mxu0
    %v1005 = vadd.f32 0.0, %v1004
    %v1006 = vpop.f32.mrf.mxu0
    %1007 = vmatprep.mubr.bf16.mxu0 0
    %1008 = vmatmul.mubr.bf16.gmra.mxu0 %v890
    %v1009 = vpop.f32.mrf.mxu0
    %v1010 = vadd.f32 0.0, %v1009
    %v1011 = vpop.f32.mrf.mxu0
    %v1012 = vpop.f32.mrf.mxu0
    %v1013 = vadd.f32 0.0, %v1012
    %v1014 = vpop.f32.mrf.mxu0
    %1015 = vmatprep.mubr.bf16.mxu0 0
    %1016 = vmatmul.mubr.bf16.gmra.mxu0 %v891
    %v1017 = vpop.f32.mrf.mxu0
    %v1018 = vadd.f32 0.0, %v1017
    %v1019 = vpop.f32.mrf.mxu0
    %v1020 = vpop.f32.mrf.mxu0
    %v1021 = vadd.f32 0.0, %v1020
    %v1022 = vpop.f32.mrf.mxu0
    %1023 = vmatprep.mubr.bf16.mxu0 0
    %1024 = vmatmul.mubr.bf16.gmra.mxu0 %v892
    %v1025 = vpop.f32.mrf.mxu0
    %v1026 = vadd.f32 0.0, %v1025
    %v1027 = vpop.f32.mrf.mxu0
    %v1028 = vpop.f32.mrf.mxu0
    %v1029 = vadd.f32 0.0, %v1028
    %v1030 = vpop.f32.mrf.mxu0
    %1031 = vmatprep.mubr.bf16.mxu0 0
    %1032 = vmatmul.mubr.bf16.gmra.mxu0 %v893
    %v1033 = vpop.f32.mrf.mxu0
    %v1034 = vadd.f32 0.0, %v1033
    %v1035 = vpop.f32.mrf.mxu0
    %v1036 = vpop.f32.mrf.mxu0
    %v1037 = vadd.f32 0.0, %v1036
    %v1038 = vpop.f32.mrf.mxu0
    %1039 = vmatprep.mubr.bf16.mxu0 0
    %1040 = vmatmul.mubr.bf16.gmra.mxu0 %v894
    %v1041 = vpop.f32.mrf.mxu0
    %v1042 = vadd.f32 0.0, %v1041
    %v1043 = vpop.f32.mrf.mxu0
    %v1044 = vpop.f32.mrf.mxu0
    %v1045 = vadd.f32 0.0, %v1044
    %v1046 = vpop.f32.mrf.mxu0
    %1047 = vmatprep.mubr.bf16.mxu0 0
    %1048 = vmatmul.mubr.bf16.gmra.mxu0 %v895
    %v1049 = vpop.f32.mrf.mxu0
    %v1050 = vadd.f32 0.0, %v1049
    %v1051 = vpop.f32.mrf.mxu0
    %v1052 = vpop.f32.mrf.mxu0
    %v1053 = vadd.f32 0.0, %v1052
    %v1054 = vpop.f32.mrf.mxu0
    %1055 = vmatprep.mubr.bf16.mxu0 0
    %1056 = vmatmul.mubr.bf16.gmra.mxu0 %v896
    %v1057 = vpop.f32.mrf.mxu0
    %v1058 = vadd.f32 0.0, %v1057
    %v1059 = vpop.f32.mrf.mxu0
    %v1060 = vpop.f32.mrf.mxu0
    %v1061 = vadd.f32 0.0, %v1060
    %v1062 = vpop.f32.mrf.mxu0
    %1063 = vmatprep.mubr.bf16.mxu0 0
    %1064 = vmatmul.mubr.bf16.gmra.mxu0 %v897
    %v1065 = vpop.f32.mrf.mxu0
    %v1066 = vadd.f32 0.0, %v1065
    %v1067 = vpop.f32.mrf.mxu0
    %v1068 = vpop.f32.mrf.mxu0
    %v1069 = vadd.f32 0.0, %v1068
    %v1070 = vpop.f32.mrf.mxu0
    %1071 = vmatprep.mubr.bf16.mxu0 0
    %1072 = vmatmul.mubr.bf16.gmra.mxu0 %v898
    %v1073 = vpop.f32.mrf.mxu0
    %v1074 = vadd.f32 0.0, %v1073
    %v1075 = vpop.f32.mrf.mxu0
    %v1076 = vpop.f32.mrf.mxu0
    %v1077 = vadd.f32 0.0, %v1076
    %v1078 = vpop.f32.mrf.mxu0
    %1079 = vmatprep.mubr.bf16.mxu0 0
    %1080 = vmatmul.mubr.bf16.gmra.mxu0 %v899
    %v1081 = vpop.f32.mrf.mxu0
    %v1082 = vadd.f32 0.0, %v1081
    %v1083 = vpop.f32.mrf.mxu0
    %v1084 = vpop.f32.mrf.mxu0
    %v1085 = vadd.f32 0.0, %v1084
    %v1086 = vpop.f32.mrf.mxu0
    %1087 = vmatprep.mubr.bf16.mxu0 0
    %1088 = vmatmul.mubr.bf16.gmra.mxu0 %v900
    %v1089 = vpop.f32.mrf.mxu0
    %v1090 = vadd.f32 0.0, %v1089
    %v1091 = vpop.f32.mrf.mxu0
    %v1092 = vpop.f32.mrf.mxu0
    %v1093 = vadd.f32 0.0, %v1092
    %v1094 = vpop.f32.mrf.mxu0
    %1095 = vmatprep.mubr.bf16.mxu0 0
    %1096 = vmatmul.mubr.bf16.gmra.mxu0 %v901
    %v1097 = vpop.f32.mrf.mxu0
    %v1098 = vadd.f32 0.0, %v1097
    %v1099 = vpop.f32.mrf.mxu0
    %v1100 = vpop.f32.mrf.mxu0
    %v1101 = vadd.f32 0.0, %v1100
    %v1102 = vpop.f32.mrf.mxu0
    %1103 = vmatprep.mubr.bf16.mxu0 0
    %1104 = vmatmul.mubr.bf16.gmra.mxu0 %v902
    %v1105 = vpop.f32.mrf.mxu0
    %v1106 = vadd.f32 0.0, %v1105
    %v1107 = vpop.f32.mrf.mxu0
    %v1108 = vpop.f32.mrf.mxu0
    %v1109 = vadd.f32 0.0, %v1108
    %v1110 = vpop.f32.mrf.mxu0
    %1111 = vdwg.mxu0
    %v1112 = vpack.c.bf16 %v989, %v986
    %v1113 = vpack.c.bf16 %v997, %v994
    %v1114 = vpack.c.bf16 %v1005, %v1002
    %v1115 = vpack.c.bf16 %v1013, %v1010
    %v1116 = vpack.c.bf16 %v1021, %v1018
    %v1117 = vpack.c.bf16 %v1029, %v1026
    %v1118 = vpack.c.bf16 %v1037, %v1034
    %v1119 = vpack.c.bf16 %v1045, %v1042
    %v1120 = vpack.c.bf16 %v1053, %v1050
    %v1121 = vpack.c.bf16 %v1061, %v1058
    %v1122 = vpack.c.bf16 %v1069, %v1066
    %v1123 = vpack.c.bf16 %v1077, %v1074
    %v1124 = vpack.c.bf16 %v1085, %v1082
    %v1125 = vpack.c.bf16 %v1093, %v1090
    %v1126 = vpack.c.bf16 %v1101, %v1098
    %v1127 = vpack.c.bf16 %v1109, %v1106
    %v1128 = vlaneseq
    %v1129 = vshrl.u32 %v1128, 7
    %v1130 = vsub.s32 0, %v1129
    %v1131 = vrot.slane %v205, %v1130
    %1132 = vmatprep.subr.bf16.mxu0 0
    %1133 = vmatpush1.bf16.msra.mxu0 %v1119
    %1134 = vmatprep.subr.bf16.mxu0 0
    %1135 = vmatpush1.bf16.msra.mxu0 %v1118
    %1136 = vmatprep.subr.bf16.mxu0 0
    %1137 = vmatpush1.bf16.msra.mxu0 %v1117
    %1138 = vmatprep.subr.bf16.mxu0 0
    %1139 = vmatpush1.bf16.msra.mxu0 %v1116
    %1140 = vmatprep.subr.bf16.mxu0 0
    %1141 = vmatpush1.bf16.msra.mxu0 %v1115
    %1142 = vmatprep.subr.bf16.mxu0 0
    %1143 = vmatpush1.bf16.msra.mxu0 %v1114
    %1144 = vmatprep.subr.bf16.mxu0 0
    %1145 = vmatpush1.bf16.msra.mxu0 %v1113
    %1146 = vmatprep.subr.bf16.mxu0 0
    %1147 = vmatpush1.bf16.msra.mxu0 %v1112
    %1148 = vmatprep.subr.bf16.mxu0 0
    %1149 = vmatpush2.bf16.msra.mxu0 %v1127
    %1150 = vmatprep.subr.bf16.mxu0 0
    %1151 = vmatpush2.bf16.msra.mxu0 %v1126
    %1152 = vmatprep.subr.bf16.mxu0 0
    %1153 = vmatpush2.bf16.msra.mxu0 %v1125
    %1154 = vmatprep.subr.bf16.mxu0 0
    %1155 = vmatpush2.bf16.msra.mxu0 %v1124
    %1156 = vmatprep.subr.bf16.mxu0 0
    %1157 = vmatpush2.bf16.msra.mxu0 %v1123
    %1158 = vmatprep.subr.bf16.mxu0 0
    %1159 = vmatpush2.bf16.msra.mxu0 %v1122
    %1160 = vmatprep.subr.bf16.mxu0 0
    %1161 = vmatpush2.bf16.msra.mxu0 %v1121
    %1162 = vmatprep.subr.bf16.mxu0 0
    %1163 = vmatpush2.bf16.msra.mxu0 %v1120
    %1164 = vmatprep.mubr.bf16.mxu0 %v631
    %1165 = vmatmul.mubr.bf16.gmra.mxu0 %v630
    %v1166 = vpop.f32.mrf.mxu0
    %v1167 = vadd.f32 %v1131, %v1166
    %v1168 = vpop.f32.mrf.mxu0
    %v1169 = vpop.f32.mrf.mxu0
    %v1170 = vadd.f32 %v1131, %v1169
    %v1171 = vpop.f32.mrf.mxu0
    %1172 = vmatprep.mubr.bf16.mxu0 %v633
    %1173 = vmatmul.mubr.bf16.gmra.mxu0 %v632
    %v1174 = vpop.f32.mrf.mxu0
    %v1175 = vadd.f32 %v1131, %v1174
    %v1176 = vpop.f32.mrf.mxu0
    %v1177 = vpop.f32.mrf.mxu0
    %v1178 = vadd.f32 %v1131, %v1177
    %v1179 = vpop.f32.mrf.mxu0
    %1180 = vmatprep.mubr.bf16.mxu0 %v635
    %1181 = vmatmul.mubr.bf16.gmra.mxu0 %v634
    %v1182 = vpop.f32.mrf.mxu0
    %v1183 = vadd.f32 %v1131, %v1182
    %v1184 = vpop.f32.mrf.mxu0
    %v1185 = vpop.f32.mrf.mxu0
    %v1186 = vadd.f32 %v1131, %v1185
    %v1187 = vpop.f32.mrf.mxu0
    %1188 = vmatprep.mubr.bf16.mxu0 %v637
    %1189 = vmatmul.mubr.bf16.gmra.mxu0 %v636
    %v1190 = vpop.f32.mrf.mxu0
    %v1191 = vadd.f32 %v1131, %v1190
    %v1192 = vpop.f32.mrf.mxu0
    %v1193 = vpop.f32.mrf.mxu0
    %v1194 = vadd.f32 %v1131, %v1193
    %v1195 = vpop.f32.mrf.mxu0
    %1196 = vmatprep.mubr.bf16.mxu0 %v639
    %1197 = vmatmul.mubr.bf16.gmra.mxu0 %v638
    %v1198 = vpop.f32.mrf.mxu0
    %v1199 = vadd.f32 %v1131, %v1198
    %v1200 = vpop.f32.mrf.mxu0
    %v1201 = vpop.f32.mrf.mxu0
    %v1202 = vadd.f32 %v1131, %v1201
    %v1203 = vpop.f32.mrf.mxu0
    %1204 = vmatprep.mubr.bf16.mxu0 %v641
    %1205 = vmatmul.mubr.bf16.gmra.mxu0 %v640
    %v1206 = vpop.f32.mrf.mxu0
    %v1207 = vadd.f32 %v1131, %v1206
    %v1208 = vpop.f32.mrf.mxu0
    %v1209 = vpop.f32.mrf.mxu0
    %v1210 = vadd.f32 %v1131, %v1209
    %v1211 = vpop.f32.mrf.mxu0
    %1212 = vmatprep.mubr.bf16.mxu0 %v643
    %1213 = vmatmul.mubr.bf16.gmra.mxu0 %v642
    %v1214 = vpop.f32.mrf.mxu0
    %v1215 = vadd.f32 %v1131, %v1214
    %v1216 = vpop.f32.mrf.mxu0
    %v1217 = vpop.f32.mrf.mxu0
    %v1218 = vadd.f32 %v1131, %v1217
    %v1219 = vpop.f32.mrf.mxu0
    %1220 = vmatprep.mubr.bf16.mxu0 %v645
    %1221 = vmatmul.mubr.bf16.gmra.mxu0 %v644
    %v1222 = vpop.f32.mrf.mxu0
    %v1223 = vadd.f32 %v1131, %v1222
    %v1224 = vpop.f32.mrf.mxu0
    %v1225 = vpop.f32.mrf.mxu0
    %v1226 = vadd.f32 %v1131, %v1225
    %v1227 = vpop.f32.mrf.mxu0
    %1228 = vmatprep.mubr.bf16.mxu0 %v647
    %1229 = vmatmul.mubr.bf16.gmra.mxu0 %v646
    %v1230 = vpop.f32.mrf.mxu0
    %v1231 = vadd.f32 %v1131, %v1230
    %v1232 = vpop.f32.mrf.mxu0
    %v1233 = vpop.f32.mrf.mxu0
    %v1234 = vadd.f32 %v1131, %v1233
    %v1235 = vpop.f32.mrf.mxu0
    %1236 = vmatprep.mubr.bf16.mxu0 %v649
    %1237 = vmatmul.mubr.bf16.gmra.mxu0 %v648
    %v1238 = vpop.f32.mrf.mxu0
    %v1239 = vadd.f32 %v1131, %v1238
    %v1240 = vpop.f32.mrf.mxu0
    %v1241 = vpop.f32.mrf.mxu0
    %v1242 = vadd.f32 %v1131, %v1241
    %v1243 = vpop.f32.mrf.mxu0
    %1244 = vmatprep.mubr.bf16.mxu0 %v651
    %1245 = vmatmul.mubr.bf16.gmra.mxu0 %v650
    %v1246 = vpop.f32.mrf.mxu0
    %v1247 = vadd.f32 %v1131, %v1246
    %v1248 = vpop.f32.mrf.mxu0
    %v1249 = vpop.f32.mrf.mxu0
    %v1250 = vadd.f32 %v1131, %v1249
    %v1251 = vpop.f32.mrf.mxu0
    %1252 = vmatprep.mubr.bf16.mxu0 %v653
    %1253 = vmatmul.mubr.bf16.gmra.mxu0 %v652
    %v1254 = vpop.f32.mrf.mxu0
    %v1255 = vadd.f32 %v1131, %v1254
    %v1256 = vpop.f32.mrf.mxu0
    %v1257 = vpop.f32.mrf.mxu0
    %v1258 = vadd.f32 %v1131, %v1257
    %v1259 = vpop.f32.mrf.mxu0
    %1260 = vmatprep.mubr.bf16.mxu0 %v655
    %1261 = vmatmul.mubr.bf16.gmra.mxu0 %v654
    %v1262 = vpop.f32.mrf.mxu0
    %v1263 = vadd.f32 %v1131, %v1262
    %v1264 = vpop.f32.mrf.mxu0
    %v1265 = vpop.f32.mrf.mxu0
    %v1266 = vadd.f32 %v1131, %v1265
    %v1267 = vpop.f32.mrf.mxu0
    %1268 = vmatprep.mubr.bf16.mxu0 %v657
    %1269 = vmatmul.mubr.bf16.gmra.mxu0 %v656
    %v1270 = vpop.f32.mrf.mxu0
    %v1271 = vadd.f32 %v1131, %v1270
    %v1272 = vpop.f32.mrf.mxu0
    %v1273 = vpop.f32.mrf.mxu0
    %v1274 = vadd.f32 %v1131, %v1273
    %v1275 = vpop.f32.mrf.mxu0
    %1276 = vmatprep.mubr.bf16.mxu0 %v659
    %1277 = vmatmul.mubr.bf16.gmra.mxu0 %v658
    %v1278 = vpop.f32.mrf.mxu0
    %v1279 = vadd.f32 %v1131, %v1278
    %v1280 = vpop.f32.mrf.mxu0
    %v1281 = vpop.f32.mrf.mxu0
    %v1282 = vadd.f32 %v1131, %v1281
    %v1283 = vpop.f32.mrf.mxu0
    %1284 = vmatprep.mubr.bf16.mxu0 %v661
    %1285 = vmatmul.mubr.bf16.gmra.mxu0 %v660
    %v1286 = vpop.f32.mrf.mxu0
    %v1287 = vadd.f32 %v1131, %v1286
    %v1288 = vpop.f32.mrf.mxu0
    %v1289 = vpop.f32.mrf.mxu0
    %v1290 = vadd.f32 %v1131, %v1289
    %v1291 = vpop.f32.mrf.mxu0
    %1292 = vdwg.mxu0
    %v1293 = vmax.f32 %v1167, 0.0
    %v1294 = vmax.f32 %v1170, 0.0
    %v1295 = vmax.f32 %v1175, 0.0
    %v1296 = vmax.f32 %v1178, 0.0
    %v1297 = vmax.f32 %v1183, 0.0
    %v1298 = vmax.f32 %v1186, 0.0
    %v1299 = vmax.f32 %v1191, 0.0
    %v1300 = vmax.f32 %v1194, 0.0
    %v1301 = vmax.f32 %v1199, 0.0
    %v1302 = vmax.f32 %v1202, 0.0
    %v1303 = vmax.f32 %v1207, 0.0
    %v1304 = vmax.f32 %v1210, 0.0
    %v1305 = vmax.f32 %v1215, 0.0
    %v1306 = vmax.f32 %v1218, 0.0
    %v1307 = vmax.f32 %v1223, 0.0
    %v1308 = vmax.f32 %v1226, 0.0
    %v1309 = vmax.f32 %v1231, 0.0
    %v1310 = vmax.f32 %v1234, 0.0
    %v1311 = vmax.f32 %v1239, 0.0
    %v1312 = vmax.f32 %v1242, 0.0
    %v1313 = vmax.f32 %v1247, 0.0
    %v1314 = vmax.f32 %v1250, 0.0
    %v1315 = vmax.f32 %v1255, 0.0
    %v1316 = vmax.f32 %v1258, 0.0
    %v1317 = vmax.f32 %v1263, 0.0
    %v1318 = vmax.f32 %v1266, 0.0
    %v1319 = vmax.f32 %v1271, 0.0
    %v1320 = vmax.f32 %v1274, 0.0
    %v1321 = vmax.f32 %v1279, 0.0
    %v1322 = vmax.f32 %v1282, 0.0
    %v1323 = vmax.f32 %v1287, 0.0
    %v1324 = vmax.f32 %v1290, 0.0
    %v1325 = vlaneseq
    %v1326 = vshrl.u32 %v1325, 7
    %v1327 = vsub.s32 0, %v1326
    %v1328 = vrot.slane %v206, %v1327
    %v1329 = vmul.f32 %v1293, %v1328
    %v1330 = vmul.f32 %v1294, %v1328
    %v1331 = vmul.f32 %v1295, %v1328
    %v1332 = vmul.f32 %v1296, %v1328
    %v1333 = vmul.f32 %v1297, %v1328
    %v1334 = vmul.f32 %v1298, %v1328
    %v1335 = vmul.f32 %v1299, %v1328
    %v1336 = vmul.f32 %v1300, %v1328
    %v1337 = vmul.f32 %v1301, %v1328
    %v1338 = vmul.f32 %v1302, %v1328
    %v1339 = vmul.f32 %v1303, %v1328
    %v1340 = vmul.f32 %v1304, %v1328
    %v1341 = vmul.f32 %v1305, %v1328
    %v1342 = vmul.f32 %v1306, %v1328
    %v1343 = vmul.f32 %v1307, %v1328
    %v1344 = vmul.f32 %v1308, %v1328
    %v1345 = vmul.f32 %v1309, %v1328
    %v1346 = vmul.f32 %v1310, %v1328
    %v1347 = vmul.f32 %v1311, %v1328
    %v1348 = vmul.f32 %v1312, %v1328
    %v1349 = vmul.f32 %v1313, %v1328
    %v1350 = vmul.f32 %v1314, %v1328
    %v1351 = vmul.f32 %v1315, %v1328
    %v1352 = vmul.f32 %v1316, %v1328
    %v1353 = vmul.f32 %v1317, %v1328
    %v1354 = vmul.f32 %v1318, %v1328
    %v1355 = vmul.f32 %v1319, %v1328
    %v1356 = vmul.f32 %v1320, %v1328
    %v1357 = vmul.f32 %v1321, %v1328
    %v1358 = vmul.f32 %v1322, %v1328
    %v1359 = vmul.f32 %v1323, %v1328
    %v1360 = vmul.f32 %v1324, %v1328
    %1361 = vadd.xlane.f32.xlu0 %v1329
    %v1362 = vpop.xlane.xlu0 %1361
    %1363 = vadd.xlane.f32.xlu0 %v1330
    %v1364 = vpop.xlane.xlu0 %1363
    %1365 = vadd.xlane.f32.xlu0 %v1331
    %v1366 = vpop.xlane.xlu0 %1365
    %1367 = vadd.xlane.f32.xlu0 %v1332
    %v1368 = vpop.xlane.xlu0 %1367
    %1369 = vadd.xlane.f32.xlu0 %v1333
    %v1370 = vpop.xlane.xlu0 %1369
    %1371 = vadd.xlane.f32.xlu0 %v1334
    %v1372 = vpop.xlane.xlu0 %1371
    %1373 = vadd.xlane.f32.xlu0 %v1335
    %v1374 = vpop.xlane.xlu0 %1373
    %1375 = vadd.xlane.f32.xlu0 %v1336
    %v1376 = vpop.xlane.xlu0 %1375
    %1377 = vadd.xlane.f32.xlu0 %v1337
    %v1378 = vpop.xlane.xlu0 %1377
    %1379 = vadd.xlane.f32.xlu0 %v1338
    %v1380 = vpop.xlane.xlu0 %1379
    %1381 = vadd.xlane.f32.xlu0 %v1339
    %v1382 = vpop.xlane.xlu0 %1381
    %1383 = vadd.xlane.f32.xlu0 %v1340
    %v1384 = vpop.xlane.xlu0 %1383
    %1385 = vadd.xlane.f32.xlu0 %v1341
    %v1386 = vpop.xlane.xlu0 %1385
    %1387 = vadd.xlane.f32.xlu0 %v1342
    %v1388 = vpop.xlane.xlu0 %1387
    %1389 = vadd.xlane.f32.xlu0 %v1343
    %v1390 = vpop.xlane.xlu0 %1389
    %1391 = vadd.xlane.f32.xlu0 %v1344
    %v1392 = vpop.xlane.xlu0 %1391
    %1393 = vadd.xlane.f32.xlu0 %v1345
    %v1394 = vpop.xlane.xlu0 %1393
    %1395 = vadd.xlane.f32.xlu0 %v1346
    %v1396 = vpop.xlane.xlu0 %1395
    %1397 = vadd.xlane.f32.xlu0 %v1347
    %v1398 = vpop.xlane.xlu0 %1397
    %1399 = vadd.xlane.f32.xlu0 %v1348
    %v1400 = vpop.xlane.xlu0 %1399
    %1401 = vadd.xlane.f32.xlu0 %v1349
    %v1402 = vpop.xlane.xlu0 %1401
    %1403 = vadd.xlane.f32.xlu0 %v1350
    %v1404 = vpop.xlane.xlu0 %1403
    %1405 = vadd.xlane.f32.xlu0 %v1351
    %v1406 = vpop.xlane.xlu0 %1405
    %1407 = vadd.xlane.f32.xlu0 %v1352
    %v1408 = vpop.xlane.xlu0 %1407
    %1409 = vadd.xlane.f32.xlu0 %v1353
    %v1410 = vpop.xlane.xlu0 %1409
    %1411 = vadd.xlane.f32.xlu0 %v1354
    %v1412 = vpop.xlane.xlu0 %1411
    %1413 = vadd.xlane.f32.xlu0 %v1355
    %v1414 = vpop.xlane.xlu0 %1413
    %1415 = vadd.xlane.f32.xlu0 %v1356
    %v1416 = vpop.xlane.xlu0 %1415
    %1417 = vadd.xlane.f32.xlu0 %v1357
    %v1418 = vpop.xlane.xlu0 %1417
    %1419 = vadd.xlane.f32.xlu0 %v1358
    %v1420 = vpop.xlane.xlu0 %1419
    %1421 = vadd.xlane.f32.xlu0 %v1359
    %v1422 = vpop.xlane.xlu0 %1421
    %1423 = vadd.xlane.f32.xlu0 %v1360
    %v1424 = vpop.xlane.xlu0 %1423
    %v1425 = vpack.c.bf16 %v1364, %v1362
    %v1426 = vpack.c.bf16 %v1368, %v1366
    %v1427 = vpack.c.bf16 %v1372, %v1370
    %v1428 = vpack.c.bf16 %v1376, %v1374
    %v1429 = vpack.c.bf16 %v1380, %v1378
    %v1430 = vpack.c.bf16 %v1384, %v1382
    %v1431 = vpack.c.bf16 %v1388, %v1386
    %v1432 = vpack.c.bf16 %v1392, %v1390
    %v1433 = vpack.c.bf16 %v1396, %v1394
    %v1434 = vpack.c.bf16 %v1400, %v1398
    %v1435 = vpack.c.bf16 %v1404, %v1402
    %v1436 = vpack.c.bf16 %v1408, %v1406
    %v1437 = vpack.c.bf16 %v1412, %v1410
    %v1438 = vpack.c.bf16 %v1416, %v1414
    %v1439 = vpack.c.bf16 %v1420, %v1418
    %v1440 = vpack.c.bf16 %v1424, %v1422
    %v1441 = vlaneseq
    %v1442 = vshrl.u32 %v1441, 7
    %v1443 = vsub.s32 0, %v1442
    %v1444 = vrot.slane %v208, %v1443
    %1445 = vmatprep.subr.bf16.mxu0 0
    %1446 = vmatpush1.bf16.msra.mxu0 %v1432
    %1447 = vmatprep.subr.bf16.mxu0 0
    %1448 = vmatpush1.bf16.msra.mxu0 %v1431
    %1449 = vmatprep.subr.bf16.mxu0 0
    %1450 = vmatpush1.bf16.msra.mxu0 %v1430
    %1451 = vmatprep.subr.bf16.mxu0 0
    %1452 = vmatpush1.bf16.msra.mxu0 %v1429
    %1453 = vmatprep.subr.bf16.mxu0 0
    %1454 = vmatpush1.bf16.msra.mxu0 %v1428
    %1455 = vmatprep.subr.bf16.mxu0 0
    %1456 = vmatpush1.bf16.msra.mxu0 %v1427
    %1457 = vmatprep.subr.bf16.mxu0 0
    %1458 = vmatpush1.bf16.msra.mxu0 %v1426
    %1459 = vmatprep.subr.bf16.mxu0 0
    %1460 = vmatpush1.bf16.msra.mxu0 %v1425
    %1461 = vmatprep.subr.bf16.mxu0 0
    %1462 = vmatpush2.bf16.msra.mxu0 %v1440
    %1463 = vmatprep.subr.bf16.mxu0 0
    %1464 = vmatpush2.bf16.msra.mxu0 %v1439
    %1465 = vmatprep.subr.bf16.mxu0 0
    %1466 = vmatpush2.bf16.msra.mxu0 %v1438
    %1467 = vmatprep.subr.bf16.mxu0 0
    %1468 = vmatpush2.bf16.msra.mxu0 %v1437
    %1469 = vmatprep.subr.bf16.mxu0 0
    %1470 = vmatpush2.bf16.msra.mxu0 %v1436
    %1471 = vmatprep.subr.bf16.mxu0 0
    %1472 = vmatpush2.bf16.msra.mxu0 %v1435
    %1473 = vmatprep.subr.bf16.mxu0 0
    %1474 = vmatpush2.bf16.msra.mxu0 %v1434
    %1475 = vmatprep.subr.bf16.mxu0 0
    %1476 = vmatpush2.bf16.msra.mxu0 %v1433
    %1477 = vmatprep.mubr.bf16.mxu0 %v631
    %1478 = vmatmul.mubr.bf16.gmra.mxu0 %v630
    %v1479 = vpop.f32.mrf.mxu0
    %v1480 = vadd.f32 %v1444, %v1479
    %v1481 = vpop.f32.mrf.mxu0
    %v1482 = vpop.f32.mrf.mxu0
    %v1483 = vadd.f32 %v1444, %v1482
    %v1484 = vpop.f32.mrf.mxu0
    %1485 = vmatprep.mubr.bf16.mxu0 %v633
    %1486 = vmatmul.mubr.bf16.gmra.mxu0 %v632
    %v1487 = vpop.f32.mrf.mxu0
    %v1488 = vadd.f32 %v1444, %v1487
    %v1489 = vpop.f32.mrf.mxu0
    %v1490 = vpop.f32.mrf.mxu0
    %v1491 = vadd.f32 %v1444, %v1490
    %v1492 = vpop.f32.mrf.mxu0
    %1493 = vmatprep.mubr.bf16.mxu0 %v635
    %1494 = vmatmul.mubr.bf16.gmra.mxu0 %v634
    %v1495 = vpop.f32.mrf.mxu0
    %v1496 = vadd.f32 %v1444, %v1495
    %v1497 = vpop.f32.mrf.mxu0
    %v1498 = vpop.f32.mrf.mxu0
    %v1499 = vadd.f32 %v1444, %v1498
    %v1500 = vpop.f32.mrf.mxu0
    %1501 = vmatprep.mubr.bf16.mxu0 %v637
    %1502 = vmatmul.mubr.bf16.gmra.mxu0 %v636
    %v1503 = vpop.f32.mrf.mxu0
    %v1504 = vadd.f32 %v1444, %v1503
    %v1505 = vpop.f32.mrf.mxu0
    %v1506 = vpop.f32.mrf.mxu0
    %v1507 = vadd.f32 %v1444, %v1506
    %v1508 = vpop.f32.mrf.mxu0
    %1509 = vmatprep.mubr.bf16.mxu0 %v639
    %1510 = vmatmul.mubr.bf16.gmra.mxu0 %v638
    %v1511 = vpop.f32.mrf.mxu0
    %v1512 = vadd.f32 %v1444, %v1511
    %v1513 = vpop.f32.mrf.mxu0
    %v1514 = vpop.f32.mrf.mxu0
    %v1515 = vadd.f32 %v1444, %v1514
    %v1516 = vpop.f32.mrf.mxu0
    %1517 = vmatprep.mubr.bf16.mxu0 %v641
    %1518 = vmatmul.mubr.bf16.gmra.mxu0 %v640
    %v1519 = vpop.f32.mrf.mxu0
    %v1520 = vadd.f32 %v1444, %v1519
    %v1521 = vpop.f32.mrf.mxu0
    %v1522 = vpop.f32.mrf.mxu0
    %v1523 = vadd.f32 %v1444, %v1522
    %v1524 = vpop.f32.mrf.mxu0
    %1525 = vmatprep.mubr.bf16.mxu0 %v643
    %1526 = vmatmul.mubr.bf16.gmra.mxu0 %v642
    %v1527 = vpop.f32.mrf.mxu0
    %v1528 = vadd.f32 %v1444, %v1527
    %v1529 = vpop.f32.mrf.mxu0
    %v1530 = vpop.f32.mrf.mxu0
    %v1531 = vadd.f32 %v1444, %v1530
    %v1532 = vpop.f32.mrf.mxu0
    %1533 = vmatprep.mubr.bf16.mxu0 %v645
    %1534 = vmatmul.mubr.bf16.gmra.mxu0 %v644
    %v1535 = vpop.f32.mrf.mxu0
    %v1536 = vadd.f32 %v1444, %v1535
    %v1537 = vpop.f32.mrf.mxu0
    %v1538 = vpop.f32.mrf.mxu0
    %v1539 = vadd.f32 %v1444, %v1538
    %v1540 = vpop.f32.mrf.mxu0
    %1541 = vmatprep.mubr.bf16.mxu0 %v647
    %1542 = vmatmul.mubr.bf16.gmra.mxu0 %v646
    %v1543 = vpop.f32.mrf.mxu0
    %v1544 = vadd.f32 %v1444, %v1543
    %v1545 = vpop.f32.mrf.mxu0
    %v1546 = vpop.f32.mrf.mxu0
    %v1547 = vadd.f32 %v1444, %v1546
    %v1548 = vpop.f32.mrf.mxu0
    %1549 = vmatprep.mubr.bf16.mxu0 %v649
    %1550 = vmatmul.mubr.bf16.gmra.mxu0 %v648
    %v1551 = vpop.f32.mrf.mxu0
    %v1552 = vadd.f32 %v1444, %v1551
    %v1553 = vpop.f32.mrf.mxu0
    %v1554 = vpop.f32.mrf.mxu0
    %v1555 = vadd.f32 %v1444, %v1554
    %v1556 = vpop.f32.mrf.mxu0
    %1557 = vmatprep.mubr.bf16.mxu0 %v651
    %1558 = vmatmul.mubr.bf16.gmra.mxu0 %v650
    %v1559 = vpop.f32.mrf.mxu0
    %v1560 = vadd.f32 %v1444, %v1559
    %v1561 = vpop.f32.mrf.mxu0
    %v1562 = vpop.f32.mrf.mxu0
    %v1563 = vadd.f32 %v1444, %v1562
    %v1564 = vpop.f32.mrf.mxu0
    %1565 = vmatprep.mubr.bf16.mxu0 %v653
    %1566 = vmatmul.mubr.bf16.gmra.mxu0 %v652
    %v1567 = vpop.f32.mrf.mxu0
    %v1568 = vadd.f32 %v1444, %v1567
    %v1569 = vpop.f32.mrf.mxu0
    %v1570 = vpop.f32.mrf.mxu0
    %v1571 = vadd.f32 %v1444, %v1570
    %v1572 = vpop.f32.mrf.mxu0
    %1573 = vmatprep.mubr.bf16.mxu0 %v655
    %1574 = vmatmul.mubr.bf16.gmra.mxu0 %v654
    %v1575 = vpop.f32.mrf.mxu0
    %v1576 = vadd.f32 %v1444, %v1575
    %v1577 = vpop.f32.mrf.mxu0
    %v1578 = vpop.f32.mrf.mxu0
    %v1579 = vadd.f32 %v1444, %v1578
    %v1580 = vpop.f32.mrf.mxu0
    %1581 = vmatprep.mubr.bf16.mxu0 %v657
    %1582 = vmatmul.mubr.bf16.gmra.mxu0 %v656
    %v1583 = vpop.f32.mrf.mxu0
    %v1584 = vadd.f32 %v1444, %v1583
    %v1585 = vpop.f32.mrf.mxu0
    %v1586 = vpop.f32.mrf.mxu0
    %v1587 = vadd.f32 %v1444, %v1586
    %v1588 = vpop.f32.mrf.mxu0
    %1589 = vmatprep.mubr.bf16.mxu0 %v659
    %1590 = vmatmul.mubr.bf16.gmra.mxu0 %v658
    %v1591 = vpop.f32.mrf.mxu0
    %v1592 = vadd.f32 %v1444, %v1591
    %v1593 = vpop.f32.mrf.mxu0
    %v1594 = vpop.f32.mrf.mxu0
    %v1595 = vadd.f32 %v1444, %v1594
    %v1596 = vpop.f32.mrf.mxu0
    %1597 = vmatprep.mubr.bf16.mxu0 %v661
    %1598 = vmatmul.mubr.bf16.gmra.mxu0 %v660
    %v1599 = vpop.f32.mrf.mxu0
    %v1600 = vadd.f32 %v1444, %v1599
    %v1601 = vpop.f32.mrf.mxu0
    %v1602 = vpop.f32.mrf.mxu0
    %v1603 = vadd.f32 %v1444, %v1602
    %v1604 = vpop.f32.mrf.mxu0
    %1605 = vdwg.mxu0
    %v1606 = vtanh.pop %v1480
    %v1607 = vtanh.pop %v1483
    %v1608 = vtanh.pop %v1488
    %v1609 = vtanh.pop %v1491
    %v1610 = vtanh.pop %v1496
    %v1611 = vtanh.pop %v1499
    %v1612 = vtanh.pop %v1504
    %v1613 = vtanh.pop %v1507
    %v1614 = vtanh.pop %v1512
    %v1615 = vtanh.pop %v1515
    %v1616 = vtanh.pop %v1520
    %v1617 = vtanh.pop %v1523
    %v1618 = vtanh.pop %v1528
    %v1619 = vtanh.pop %v1531
    %v1620 = vtanh.pop %v1536
    %v1621 = vtanh.pop %v1539
    %v1622 = vtanh.pop %v1544
    %v1623 = vtanh.pop %v1547
    %v1624 = vtanh.pop %v1552
    %v1625 = vtanh.pop %v1555
    %v1626 = vtanh.pop %v1560
    %v1627 = vtanh.pop %v1563
    %v1628 = vtanh.pop %v1568
    %v1629 = vtanh.pop %v1571
    %v1630 = vtanh.pop %v1576
    %v1631 = vtanh.pop %v1579
    %v1632 = vtanh.pop %v1584
    %v1633 = vtanh.pop %v1587
    %v1634 = vtanh.pop %v1592
    %v1635 = vtanh.pop %v1595
    %v1636 = vtanh.pop %v1600
    %v1637 = vtanh.pop %v1603
    %1639 = vset.pattern.permute.xlu0 0
    %1640 = vperm.xlu0 %1639, %v1606
    %v1641 = vpop.permute.xlu0 %1640
    %1644 = vset.pattern.permute.xlu0 0
    %1645 = vperm.xlu0 %1644, %v1607
    %v1646 = vpop.permute.xlu0 %1645
    %1649 = vset.pattern.permute.xlu0 0
    %1650 = vperm.xlu0 %1649, %v1608
    %v1651 = vpop.permute.xlu0 %1650
    %1654 = vset.pattern.permute.xlu0 0
    %1655 = vperm.xlu0 %1654, %v1609
    %v1656 = vpop.permute.xlu0 %1655
    %1659 = vset.pattern.permute.xlu0 0
    %1660 = vperm.xlu0 %1659, %v1610
    %v1661 = vpop.permute.xlu0 %1660
    %1664 = vset.pattern.permute.xlu0 0
    %1665 = vperm.xlu0 %1664, %v1611
    %v1666 = vpop.permute.xlu0 %1665
    %1669 = vset.pattern.permute.xlu0 0
    %1670 = vperm.xlu0 %1669, %v1612
    %v1671 = vpop.permute.xlu0 %1670
    %1674 = vset.pattern.permute.xlu0 0
    %1675 = vperm.xlu0 %1674, %v1613
    %v1676 = vpop.permute.xlu0 %1675
    %1679 = vset.pattern.permute.xlu0 0
    %1680 = vperm.xlu0 %1679, %v1614
    %v1681 = vpop.permute.xlu0 %1680
    %1684 = vset.pattern.permute.xlu0 0
    %1685 = vperm.xlu0 %1684, %v1615
    %v1686 = vpop.permute.xlu0 %1685
    %1689 = vset.pattern.permute.xlu0 0
    %1690 = vperm.xlu0 %1689, %v1616
    %v1691 = vpop.permute.xlu0 %1690
    %1694 = vset.pattern.permute.xlu0 0
    %1695 = vperm.xlu0 %1694, %v1617
    %v1696 = vpop.permute.xlu0 %1695
    %1699 = vset.pattern.permute.xlu0 0
    %1700 = vperm.xlu0 %1699, %v1618
    %v1701 = vpop.permute.xlu0 %1700
    %1704 = vset.pattern.permute.xlu0 0
    %1705 = vperm.xlu0 %1704, %v1619
    %v1706 = vpop.permute.xlu0 %1705
    %1709 = vset.pattern.permute.xlu0 0
    %1710 = vperm.xlu0 %1709, %v1620
    %v1711 = vpop.permute.xlu0 %1710
    %1714 = vset.pattern.permute.xlu0 0
    %1715 = vperm.xlu0 %1714, %v1621
    %v1716 = vpop.permute.xlu0 %1715
    %1719 = vset.pattern.permute.xlu0 0
    %1720 = vperm.xlu0 %1719, %v1622
    %v1721 = vpop.permute.xlu0 %1720
    %1724 = vset.pattern.permute.xlu0 0
    %1725 = vperm.xlu0 %1724, %v1623
    %v1726 = vpop.permute.xlu0 %1725
    %1729 = vset.pattern.permute.xlu0 0
    %1730 = vperm.xlu0 %1729, %v1624
    %v1731 = vpop.permute.xlu0 %1730
    %1734 = vset.pattern.permute.xlu0 0
    %1735 = vperm.xlu0 %1734, %v1625
    %v1736 = vpop.permute.xlu0 %1735
    %1739 = vset.pattern.permute.xlu0 0
    %1740 = vperm.xlu0 %1739, %v1626
    %v1741 = vpop.permute.xlu0 %1740
    %1744 = vset.pattern.permute.xlu0 0
    %1745 = vperm.xlu0 %1744, %v1627
    %v1746 = vpop.permute.xlu0 %1745
    %1749 = vset.pattern.permute.xlu0 0
    %1750 = vperm.xlu0 %1749, %v1628
    %v1751 = vpop.permute.xlu0 %1750
    %1754 = vset.pattern.permute.xlu0 0
    %1755 = vperm.xlu0 %1754, %v1629
    %v1756 = vpop.permute.xlu0 %1755
    %1759 = vset.pattern.permute.xlu0 0
    %1760 = vperm.xlu0 %1759, %v1630
    %v1761 = vpop.permute.xlu0 %1760
    %1764 = vset.pattern.permute.xlu0 0
    %1765 = vperm.xlu0 %1764, %v1631
    %v1766 = vpop.permute.xlu0 %1765
    %1769 = vset.pattern.permute.xlu0 0
    %1770 = vperm.xlu0 %1769, %v1632
    %v1771 = vpop.permute.xlu0 %1770
    %1774 = vset.pattern.permute.xlu0 0
    %1775 = vperm.xlu0 %1774, %v1633
    %v1776 = vpop.permute.xlu0 %1775
    %1779 = vset.pattern.permute.xlu0 0
    %1780 = vperm.xlu0 %1779, %v1634
    %v1781 = vpop.permute.xlu0 %1780
    %1784 = vset.pattern.permute.xlu0 0
    %1785 = vperm.xlu0 %1784, %v1635
    %v1786 = vpop.permute.xlu0 %1785
    %1789 = vset.pattern.permute.xlu0 0
    %1790 = vperm.xlu0 %1789, %v1636
    %v1791 = vpop.permute.xlu0 %1790
    %1794 = vset.pattern.permute.xlu0 0
    %1795 = vperm.xlu0 %1794, %v1637
    %v1796 = vpop.permute.xlu0 %1795
    %v1798 = vmul.f32 %v1293, %v1641
    %v1799 = vmul.f32 %v1294, %v1646
    %v1800 = vmul.f32 %v1295, %v1651
    %v1801 = vmul.f32 %v1296, %v1656
    %v1802 = vmul.f32 %v1297, %v1661
    %v1803 = vmul.f32 %v1298, %v1666
    %v1804 = vmul.f32 %v1299, %v1671
    %v1805 = vmul.f32 %v1300, %v1676
    %v1806 = vmul.f32 %v1301, %v1681
    %v1807 = vmul.f32 %v1302, %v1686
    %v1808 = vmul.f32 %v1303, %v1691
    %v1809 = vmul.f32 %v1304, %v1696
    %v1810 = vmul.f32 %v1305, %v1701
    %v1811 = vmul.f32 %v1306, %v1706
    %v1812 = vmul.f32 %v1307, %v1711
    %v1813 = vmul.f32 %v1308, %v1716
    %v1814 = vmul.f32 %v1309, %v1721
    %v1815 = vmul.f32 %v1310, %v1726
    %v1816 = vmul.f32 %v1311, %v1731
    %v1817 = vmul.f32 %v1312, %v1736
    %v1818 = vmul.f32 %v1313, %v1741
    %v1819 = vmul.f32 %v1314, %v1746
    %v1820 = vmul.f32 %v1315, %v1751
    %v1821 = vmul.f32 %v1316, %v1756
    %v1822 = vmul.f32 %v1317, %v1761
    %v1823 = vmul.f32 %v1318, %v1766
    %v1824 = vmul.f32 %v1319, %v1771
    %v1825 = vmul.f32 %v1320, %v1776
    %v1826 = vmul.f32 %v1321, %v1781
    %v1827 = vmul.f32 %v1322, %v1786
    %v1828 = vmul.f32 %v1323, %v1791
    %v1829 = vmul.f32 %v1324, %v1796
    %v1830 = vpack.c.bf16 %v1799, %v1798
    %v1831 = vpack.c.bf16 %v1801, %v1800
    %v1832 = vpack.c.bf16 %v1803, %v1802
    %v1833 = vpack.c.bf16 %v1805, %v1804
    %v1834 = vpack.c.bf16 %v1807, %v1806
    %v1835 = vpack.c.bf16 %v1809, %v1808
    %v1836 = vpack.c.bf16 %v1811, %v1810
    %v1837 = vpack.c.bf16 %v1813, %v1812
    %v1838 = vpack.c.bf16 %v1815, %v1814
    %v1839 = vpack.c.bf16 %v1817, %v1816
    %v1840 = vpack.c.bf16 %v1819, %v1818
    %v1841 = vpack.c.bf16 %v1821, %v1820
    %v1842 = vpack.c.bf16 %v1823, %v1822
    %v1843 = vpack.c.bf16 %v1825, %v1824
    %v1844 = vpack.c.bf16 %v1827, %v1826
    %v1845 = vpack.c.bf16 %v1829, %v1828
    %v1850 = vunpack.c.l.b16 %v152
    %v1851 = vunpack.c.h.b16 %v152
    %v1852 = vunpack.c.l.b16 %v153
    %v1853 = vunpack.c.h.b16 %v153
    %v1854 = vunpack.c.l.b16 %v154
    %v1855 = vunpack.c.h.b16 %v154
    %v1856 = vunpack.c.l.b16 %v155
    %v1857 = vunpack.c.h.b16 %v155
    %v1858 = vpack.c.b16 %v1852, %v1850
    %v1859 = vpack.c.b16 %v1853, %v1851
    %v1860 = vpack.c.b16 %v1856, %v1854
    %v1861 = vpack.c.b16 %v1857, %v1855
    %1866 = vmatprep.subr.bf16.mxu0 0
    %1867 = vmatpush1.bf16.msra.mxu0 %v1837
    %1868 = vmatprep.subr.bf16.mxu0 0
    %1869 = vmatpush1.bf16.msra.mxu0 %v1836
    %1870 = vmatprep.subr.bf16.mxu0 0
    %1871 = vmatpush1.bf16.msra.mxu0 %v1835
    %1872 = vmatprep.subr.bf16.mxu0 0
    %1873 = vmatpush1.bf16.msra.mxu0 %v1834
    %1874 = vmatprep.subr.bf16.mxu0 0
    %1875 = vmatpush1.bf16.msra.mxu0 %v1833
    %1876 = vmatprep.subr.bf16.mxu0 0
    %1877 = vmatpush1.bf16.msra.mxu0 %v1832
    %1878 = vmatprep.subr.bf16.mxu0 0
    %1879 = vmatpush1.bf16.msra.mxu0 %v1831
    %1880 = vmatprep.subr.bf16.mxu0 0
    %1881 = vmatpush1.bf16.msra.mxu0 %v1830
    %1882 = vmatprep.subr.bf16.mxu0 0
    %1883 = vmatpush2.bf16.msra.mxu0 %v1845
    %1884 = vmatprep.subr.bf16.mxu0 0
    %1885 = vmatpush2.bf16.msra.mxu0 %v1844
    %1886 = vmatprep.subr.bf16.mxu0 0
    %1887 = vmatpush2.bf16.msra.mxu0 %v1843
    %1888 = vmatprep.subr.bf16.mxu0 0
    %1889 = vmatpush2.bf16.msra.mxu0 %v1842
    %1890 = vmatprep.subr.bf16.mxu0 0
    %1891 = vmatpush2.bf16.msra.mxu0 %v1841
    %1892 = vmatprep.subr.bf16.mxu0 0
    %1893 = vmatpush2.bf16.msra.mxu0 %v1840
    %1894 = vmatprep.subr.bf16.mxu0 0
    %1895 = vmatpush2.bf16.msra.mxu0 %v1839
    %1896 = vmatprep.subr.bf16.mxu0 0
    %1897 = vmatpush2.bf16.msra.mxu0 %v1838
    %1898 = vmatprep.mubr.bf16.mxu0 %v1859
    %1899 = vmatmul.mubr.bf16.gmra.mxu0 %v1858
    %v1900 = vpop.f32.mrf.mxu0
    %v1901 = vadd.f32 0.0, %v1900
    %v1902 = vpop.f32.mrf.mxu0
    %v1903 = vpop.f32.mrf.mxu0
    %v1904 = vadd.f32 0.0, %v1903
    %v1905 = vpop.f32.mrf.mxu0
    %1906 = vmatprep.mubr.bf16.mxu0 %v1861
    %1907 = vmatmul.mubr.bf16.gmra.mxu0 %v1860
    %v1908 = vpop.f32.mrf.mxu0
    %v1909 = vadd.f32 0.0, %v1908
    %v1910 = vpop.f32.mrf.mxu0
    %v1911 = vpop.f32.mrf.mxu0
    %v1912 = vadd.f32 0.0, %v1911
    %v1913 = vpop.f32.mrf.mxu0
    %1914 = vdwg.mxu0
    %v1915 = vmax.f32 %v1901, 0.0
    %v1916 = vmax.f32 %v1904, 0.0
    %v1917 = vmax.f32 %v1909, 0.0
    %v1918 = vmax.f32 %v1912, 0.0
    %v1919 = vpack.c.bf16 %v1916, %v1915
    %v1920 = vpack.c.bf16 %v1918, %v1917
    %v1921 = vlaneseq
    %v1922 = vshrl.u32 %v1921, 7
    %v1923 = vsub.s32 0, %v1922
    %v1924 = vrot.slane %v207, %v1923
    %v1941 = vunpack.c.l.b16 %v188
    %v1942 = vunpack.c.l.b16 %v189
    %v1943 = vunpack.c.l.b16 %v190
    %v1944 = vunpack.c.l.b16 %v191
    %v1945 = vunpack.c.l.b16 %v192
    %v1946 = vunpack.c.l.b16 %v193
    %v1947 = vunpack.c.l.b16 %v194
    %v1948 = vunpack.c.l.b16 %v195
    %v1949 = vunpack.c.l.b16 %v196
    %v1950 = vunpack.c.l.b16 %v197
    %v1951 = vunpack.c.l.b16 %v198
    %v1952 = vunpack.c.l.b16 %v199
    %v1953 = vunpack.c.l.b16 %v200
    %v1954 = vunpack.c.l.b16 %v201
    %v1955 = vunpack.c.l.b16 %v202
    %v1956 = vunpack.c.l.b16 %v203
    %v1957 = vpack.c.b16 %v1942, %v1941
    %v1958 = vpack.c.b16 %v1944, %v1943
    %v1959 = vpack.c.b16 %v1946, %v1945
    %v1960 = vpack.c.b16 %v1948, %v1947
    %v1961 = vpack.c.b16 %v1950, %v1949
    %v1962 = vpack.c.b16 %v1952, %v1951
    %v1963 = vpack.c.b16 %v1954, %v1953
    %v1964 = vpack.c.b16 %v1956, %v1955
    %1973 = vmatprep.subr.bf16.mxu0 0
    %1974 = vmatpush1.bf16.msra.mxu0 %v1964
    %1975 = vmatprep.subr.bf16.mxu0 0
    %1976 = vmatpush1.bf16.msra.mxu0 %v1963
    %1977 = vmatprep.subr.bf16.mxu0 0
    %1978 = vmatpush1.bf16.msra.mxu0 %v1962
    %1979 = vmatprep.subr.bf16.mxu0 0
    %1980 = vmatpush1.bf16.msra.mxu0 %v1961
    %1981 = vmatprep.subr.bf16.mxu0 0
    %1982 = vmatpush1.bf16.msra.mxu0 %v1960
    %1983 = vmatprep.subr.bf16.mxu0 0
    %1984 = vmatpush1.bf16.msra.mxu0 %v1959
    %1985 = vmatprep.subr.bf16.mxu0 0
    %1986 = vmatpush1.bf16.msra.mxu0 %v1958
    %1987 = vmatprep.subr.bf16.mxu0 0
    %1988 = vmatpush1.bf16.msra.mxu0 %v1957
    %1989 = vmatprep.subr.bf16.mxu0 0
    %1990 = vmatpush2.bf16.msra.mxu0 0
    %1991 = vmatprep.subr.bf16.mxu0 0
    %1992 = vmatpush2.bf16.msra.mxu0 0
    %1993 = vmatprep.subr.bf16.mxu0 0
    %1994 = vmatpush2.bf16.msra.mxu0 0
    %1995 = vmatprep.subr.bf16.mxu0 0
    %1996 = vmatpush2.bf16.msra.mxu0 0
    %1997 = vmatprep.subr.bf16.mxu0 0
    %1998 = vmatpush2.bf16.msra.mxu0 0
    %1999 = vmatprep.subr.bf16.mxu0 0
    %2000 = vmatpush2.bf16.msra.mxu0 0
    %2001 = vmatprep.subr.bf16.mxu0 0
    %2002 = vmatpush2.bf16.msra.mxu0 0
    %2003 = vmatprep.subr.bf16.mxu0 0
    %2004 = vmatpush2.bf16.msra.mxu0 0
    %2005 = vmatprep.mubr.bf16.mxu0 0
    %2006 = vmatmul.mubr.bf16.gmra.mxu0 %v1919
    %v2007 = vpop.f32.mrf.mxu0
    %v2008 = vadd.f32 %v1924, %v2007
    %v2009 = vpop.f32.mrf.mxu0
    %v2010 = vpop.f32.mrf.mxu0
    %v2011 = vadd.f32 %v1924, %v2010
    %v2012 = vpop.f32.mrf.mxu0
    %2013 = vmatprep.mubr.bf16.mxu0 0
    %2014 = vmatmul.mubr.bf16.gmra.mxu0 %v1920
    %v2015 = vpop.f32.mrf.mxu0
    %v2016 = vadd.f32 %v1924, %v2015
    %v2017 = vpop.f32.mrf.mxu0
    %v2018 = vpop.f32.mrf.mxu0
    %v2019 = vadd.f32 %v1924, %v2018
    %v2020 = vpop.f32.mrf.mxu0
    %2021 = vdwg.mxu0
    %2022 = vst [vmem:[#allocation11] sm:$0xff] %v2008
    %2023 = vst [vmem:[#allocation11 + $0x8] sm:$0xff] %v2011
    %2024 = vst [vmem:[#allocation11 + $0x10] sm:$0xff] %v2016
    %2025 = vst [vmem:[#allocation11 + $0x18] sm:$0xff] %v2019
    // Predicated region
    $region42: #{tpu_custom_call.1} parent=1 // pred_check
      _
    $region43: #{tpu_custom_call.1} parent=1 // pred_check_branch
      %2027 = sbr.rel (0) target = $region45
    $region44: #{tpu_custom_call.1} parent=1 // pred_region
      %s2029 = ssub.s32 512, 512
      %2030 = vsyncadd [#allocation4], %s2029
      %s2031 = sshll.u32 [#allocation11], 4
      %s2032 = int_to_ptr.vmem [resolvable:$true] %s2031
      %2037 = dma.vmem_to_hbm [thread:$0]  %s2032, 512, %s5, [#allocation4], 128, 128, 8
    $region45: #{tpu_custom_call.1} parent=1 // pred_fallthru
      _
    // Predicated region
    $region46: #{tpu_custom_call.1} parent=1 // pred_check
      _
    $region47: #{tpu_custom_call.1} parent=1 // pred_check_branch
      %2039 = sbr.rel (0) target = $region49
    $region48: #{tpu_custom_call.1} parent=1 // pred_region
      %2040 = dma.done [#allocation4], 512
    $region49: #{tpu_custom_call.1} parent=1 // pred_fallthru
      _
    %2041 = vsyncpa [#allocation3], 1
    %2042 = vsyncpa [#allocation6], 1
    %2043 = vsyncpa [#allocation9], 1
    %2044 = vsyncpa [#allocation4], 1

</llo_original>
